<compile_context>
chip_gen: v5e
topology: v5e:2x2
jax: 0.10.0
libtpu: 0.0.40
codegen_flags: <defaults>
</compile_context>

<pallas_src>
import jax
import jax.numpy as jnp
from jax.experimental import pallas as pl
from jax.experimental.pallas import tpu as pltpu

EPS = 1e-5
_VMEM_LIMIT = 48 * 1024 * 1024   # safe on v5e/v6e (128 MiB) and v7x (64 MiB physical VMEM)


def _round_up(x, m):
    return (x + m - 1) // m * m


# ---------------------------------------------------------------------------
# In-kernel 3x3 conv (stride 1, pad 1) as 9 accumulated tap matmuls.
# ---------------------------------------------------------------------------
def _conv_taps(a_f32, w_ref, H, W, Cp):
    """a_f32: (H+2, W+2, Cp) f32 spatially padded activation; w_ref: (9, Cp, Cp) bf16 ref."""
    acc = jnp.zeros((H * W, Cp), jnp.float32)
    for t in range(9):
        dh, dw = divmod(t, 3)
        patch = a_f32[dh:dh + H, dw:dw + W, :].reshape(H * W, Cp).astype(jnp.bfloat16)
        acc = acc + jnp.dot(patch, w_ref[t], preferred_element_type=jnp.float32)
    return acc


def _make_conv_stats_kernel(H, W, Cp, fuse_bn_relu):
    """conv(3x3) + per-image BN partial statistics; optionally fuses the preceding (folded)
    BN + ReLU so the intermediate activation never touches HBM."""
    if fuse_bn_relu:
        def kernel(act_ref, mask_ref, scale_ref, shift_ref, w_ref, y_ref, s_ref, q_ref):
            a = act_ref[0].astype(jnp.float32)                               # (H+2, W+2, Cp)
            # folded BN + ReLU; mask re-zeros the halo ring (relu(shift) would otherwise leak)
            a = jnp.maximum(a * scale_ref[...] + shift_ref[...], 0.0) * mask_ref[0]
            acc = _conv_taps(a, w_ref, H, W, Cp)
            y_ref[...] = acc.reshape(1, H, W, Cp)
            s_ref[0] = jnp.sum(acc, axis=0, keepdims=True)
            q_ref[0] = jnp.sum(acc * acc, axis=0, keepdims=True)
    else:
        def kernel(act_ref, w_ref, y_ref, s_ref, q_ref):
            a = act_ref[0].astype(jnp.float32)                               # bf16 -> f32
            acc = _conv_taps(a, w_ref, H, W, Cp)
            y_ref[...] = acc.reshape(1, H, W, Cp)
            s_ref[0] = jnp.sum(acc, axis=0, keepdims=True)
            q_ref[0] = jnp.sum(acc * acc, axis=0, keepdims=True)
    return kernel


def _conv_bn_stats_call(act_padded, w_taps, mask=None, scale=None, shift=None):
    """Per-image conv (+ optional fused preceding BN+ReLU) kernel.

    act_padded: (N, H+2, W+2, Cp)  bf16 (first conv) or f32 pre-BN activation (second conv)
    Returns: y (N, H, W, Cp) f32, per-image channel sums / sums-of-squares (N, 1, Cp) f32.
    """
    N, Hp, Wp, Cp = act_padded.shape
    H, W = Hp - 2, Wp - 2
    fused = scale is not None

    kernel = _make_conv_stats_kernel(H, W, Cp, fuse_bn_relu=fused)

    act_spec = pl.BlockSpec((1, Hp, Wp, Cp), lambda n: (n, 0, 0, 0))
    w_spec = pl.BlockSpec((9, Cp, Cp), lambda n: (0, 0, 0))
    vec_spec = pl.BlockSpec((1, Cp), lambda n: (0, 0))
    mask_spec = pl.BlockSpec((1, Hp, Wp, Cp), lambda n: (0, 0, 0, 0))

    if fused:
        in_specs = [act_spec, mask_spec, vec_spec, vec_spec, w_spec]
        args = (act_padded, mask, scale, shift, w_taps)
    else:
        in_specs = [act_spec, w_spec]
        args = (act_padded, w_taps)

    flops = 2 * N * H * W * 9 * Cp * Cp
    bytes_accessed = sum(int(a.size) * a.dtype.itemsize for a in args) \
        + N * H * W * Cp * 4 + 2 * N * Cp * 4

    return pl.pallas_call(
        kernel,
        out_shape=(
            jax.ShapeDtypeStruct((N, H, W, Cp), jnp.float32),
            jax.ShapeDtypeStruct((N, 1, Cp), jnp.float32),
            jax.ShapeDtypeStruct((N, 1, Cp), jnp.float32),
        ),
        grid=(N,),
        in_specs=in_specs,
        out_specs=(
            pl.BlockSpec((1, H, W, Cp), lambda n: (n, 0, 0, 0)),
            pl.BlockSpec((1, 1, Cp), lambda n: (n, 0, 0)),
            pl.BlockSpec((1, 1, Cp), lambda n: (n, 0, 0)),
        ),
        compiler_params=pltpu.CompilerParams(
            dimension_semantics=("parallel",),
            vmem_limit_bytes=_VMEM_LIMIT),
        cost_estimate=pl.CostEstimate(
            flops=int(flops), transcendentals=0, bytes_accessed=int(bytes_accessed)),
    )(*args)


# ---------------------------------------------------------------------------
# Epilogue: folded BN2 + residual + ReLU, tiled over M rows, lane-dense output.
# ---------------------------------------------------------------------------
def _bn_residual_relu_kernel(y_ref, res_ref, scale_ref, shift_ref, out_ref):
    out_ref[...] = jnp.maximum(
        y_ref[...] * scale_ref[...] + shift_ref[...] + res_ref[...], 0.0)


def _pick_tile_m(M, max_tile=1024):
    for t in range(min(M, max_tile), 0, -1):
        if M % t == 0 and (t % 8 == 0 or t == M):
            return t
    return M


def _bn_residual_relu_call(y_flat, res_flat, scale, shift):
    M, Cp = y_flat.shape
    tm = _pick_tile_m(M)
    big = pl.BlockSpec((tm, Cp), lambda i: (i, 0))
    vec = pl.BlockSpec((1, Cp), lambda i: (0, 0))
    bytes_accessed = 3 * M * Cp * 4 + 2 * Cp * 4
    return pl.pallas_call(
        _bn_residual_relu_kernel,
        out_shape=jax.ShapeDtypeStruct((M, Cp), jnp.float32),
        grid=(M // tm,),
        in_specs=[big, big, vec, vec],
        out_specs=big,
        compiler_params=pltpu.CompilerParams(
            dimension_semantics=("parallel",),
            vmem_limit_bytes=_VMEM_LIMIT),
        cost_estimate=pl.CostEstimate(
            flops=4 * M * Cp, transcendentals=0, bytes_accessed=int(bytes_accessed)),
    )(y_flat, res_flat, scale, shift)


# ---------------------------------------------------------------------------
# Wrapper glue: layout plumbing, weight/tap packing, BN fold.
# ---------------------------------------------------------------------------
def _weights_to_taps(w_oihw, Cp):
    """PyTorch (Cout, Cin, 3, 3) -> (9, Cp, Cp) bf16; tap t = kh*3 + kw, W_t[ci, co]."""
    Cout, Cin, KH, KW = w_oihw.shape
    w = jnp.transpose(w_oihw.astype(jnp.float32), (2, 3, 1, 0)).reshape(KH * KW, Cin, Cout)
    w = jnp.pad(w, ((0, 0), (0, Cp - Cin), (0, Cp - Cout)))
    return w.astype(jnp.bfloat16)


def _pad_vec(v, Cp):
    return jnp.pad(v.astype(jnp.float32), (0, Cp - v.shape[0])).reshape(1, Cp)


def _fold_bn(s, q, gamma_p, beta_p, count):
    """Fold per-image partial sums into per-channel BN scale/shift (f32, biased variance)."""
    mean = jnp.sum(s, axis=0) / count                                    # (1, Cp)
    var = jnp.maximum(jnp.sum(q, axis=0) / count - mean * mean, 0.0)
    scale = gamma_p * jax.lax.rsqrt(var + EPS)
    shift = beta_p - mean * scale
    return scale, shift


def resnet_block_forward(x_nchw, params):
    """Pallas ResNetBlock forward (stride=1, in_channels == out_channels), training-mode BN."""
    N, C, H, W = x_nchw.shape
    # TODO(synk): stride != 1 / channel-changing variants are not implemented (the PyTorch
    # module's `out += residual` requires matching shapes anyway).
    Cp = _round_up(C, 128)
    Hp, Wp = H + 2, W + 2
    M = N * H * W

    x_nhwc = jnp.transpose(x_nchw, (0, 2, 3, 1)).astype(jnp.float32)          # (N,H,W,C)
    x_pad = jnp.pad(x_nhwc, ((0, 0), (1, 1), (1, 1), (0, Cp - C)))            # (N,Hp,Wp,Cp)
    res_flat = jnp.pad(x_nhwc, ((0, 0), (0, 0), (0, 0), (0, Cp - C))).reshape(M, Cp)

    w1_taps = _weights_to_taps(params["w1"], Cp)
    w2_taps = _weights_to_taps(params["w2"], Cp)
    g1, bt1 = _pad_vec(params["g1"], Cp), _pad_vec(params["bt1"], Cp)
    g2, bt2 = _pad_vec(params["g2"], Cp), _pad_vec(params["bt2"], Cp)
    # Conv biases (params["b1"]/["b2"]) are intentionally not used by the kernels: they are
    # exactly cancelled by the BatchNorm mean subtraction that immediately follows each conv.

    # Border mask for the fused BN1+ReLU inside the conv2 kernel: keeps the zero-padding ring
    # at exactly zero (relu(shift) on the padding would otherwise leak into the second conv).
    mask_hw = jnp.zeros((Hp, Wp), jnp.float32).at[1:1 + H, 1:1 + W].set(1.0)
    mask = jnp.broadcast_to(mask_hw[None, :, :, None], (1, Hp, Wp, Cp))

    # --- conv1 (+ per-image BN1 partial stats), bf16 activation / weights on the MXU ---
    y1, s1, q1 = _conv_bn_stats_call(x_pad.astype(jnp.bfloat16), w1_taps)
    scale1, shift1 = _fold_bn(s1, q1, g1, bt1, float(M))

    # --- fused BN1-apply + ReLU + conv2 (+ per-image BN2 partial stats); a1 never hits HBM ---
    # TODO(synk): the spatial re-pad of y1 could be folded into the first kernel's store.
    y1_pad = jnp.pad(y1, ((0, 0), (1, 1), (1, 1), (0, 0)))
    y2, s2, q2 = _conv_bn_stats_call(y1_pad, w2_taps, mask=mask, scale=scale1, shift=shift1)
    scale2, shift2 = _fold_bn(s2, q2, g2, bt2, float(M))

    # --- BN2-apply + residual + ReLU, tiled over M rows, 128-lane-dense output ---
    out_flat = _bn_residual_relu_call(y2.reshape(M, Cp), res_flat, scale2, shift2)

    out_nhwc = out_flat.reshape(N, H, W, Cp)[:, :, :, :C]
    return jnp.transpose(out_nhwc, (0, 3, 1, 2))                              # back to NCHW


# ---------------------------------------------------------------------------
# Plain-JAX reference mirroring the PyTorch training-mode forward.
# `matmul_dtype=bfloat16` reproduces the kernel's deliberate MXU precision.
# ---------------------------------------------------------------------------
def resnet_block_reference(x, params, matmul_dtype=jnp.float32):
    def conv(z, w, b):
        y = jax.lax.conv_general_dilated(
            z.astype(matmul_dtype), w.astype(matmul_dtype),
            window_strides=(1, 1), padding=((1, 1), (1, 1)),
            dimension_numbers=("NCHW", "OIHW", "NCHW"),
            preferred_element_type=jnp.float32)
        return y + b[None, :, None, None]

    def bn(z, g, bt):
        mean = jnp.mean(z, axis=(0, 2, 3), keepdims=True)
        var = jnp.mean((z - mean) ** 2, axis=(0, 2, 3), keepdims=True)
        zh = (z - mean) * jax.lax.rsqrt(var + EPS)
        return zh * g[None, :, None, None] + bt[None, :, None, None]

    a1 = jax.nn.relu(bn(conv(x, params["w1"], params["b1"]), params["g1"], params["bt1"]))
    out = bn(conv(a1, params["w2"], params["b2"]), params["g2"], params["bt2"])
    return jax.nn.relu(out + x)


# ---------------------------------------------------------------------------
if __name__ == "__main__":
    N, C, H, W = 2, 4, 16, 16          # in_channels == out_channels == 4, stride = 1
    key = jax.random.PRNGKey(0)
    ks = jax.random.split(key, 5)

    fan_in = C * 3 * 3
    bound = 1.0 / (fan_in ** 0.5)
    params = {
        "w1": jax.random.uniform(ks[0], (C, C, 3, 3), jnp.float32, -bound, bound),
        "b1": jax.random.uniform(ks[1], (C,), jnp.float32, -bound, bound),
        "w2": jax.random.uniform(ks[2], (C, C, 3, 3), jnp.float32, -bound, bound),
        "b2": jax.random.uniform(ks[3], (C,), jnp.float32, -bound, bound),
        "g1": jnp.ones((C,), jnp.float32),
        "bt1": jnp.zeros((C,), jnp.float32),
        "g2": jnp.ones((C,), jnp.float32),
        "bt2": jnp.zeros((C,), jnp.float32),
    }
    x = jax.random.normal(ks[4], (N, C, H, W), jnp.float32)

    out = jax.block_until_ready(resnet_block_forward(x, params))
    assert out.shape == (N, C, H, W)

    # Strict check against a reference using the same bf16 MXU precision as the kernel.
    ref_bf16 = jax.block_until_ready(resnet_block_reference(x, params, jnp.bfloat16))
    err_bf16 = float(jnp.max(jnp.abs(out - ref_bf16)))
    assert jnp.allclose(out, ref_bf16, rtol=2e-3, atol=2e-3), \
        f"bf16-matched max abs diff = {err_bf16}"

    # Looser check against the pure-f32 reference (difference is the deliberate bf16 matmul).
    ref_f32 = jax.block_until_ready(resnet_block_reference(x, params))
    err_f32 = float(jnp.max(jnp.abs(out - ref_f32)))
    assert jnp.allclose(out, ref_f32, rtol=7e-2, atol=7e-2), \
        f"f32 max abs diff = {err_f32}"

    print("KERNEL_OK")
</pallas_src>

<mosaic_0001>
module attributes {stable_mosaic.version = 11 : i64} {
  func.func @kernel(%arg0: i32, %arg1: memref<1x18x18x128xbf16, #tpu.memory_space<vmem>>, %arg2: memref<9x128x128xbf16, #tpu.memory_space<vmem>>, %arg3: memref<1x16x16x128xf32, #tpu.memory_space<vmem>>, %arg4: memref<1x1x128xf32, #tpu.memory_space<vmem>>, %arg5: memref<1x1x128xf32, #tpu.memory_space<vmem>>) attributes {dimension_semantics = [#tpu.dimension_semantics<parallel>], iteration_bounds = array<i64: 2>, scalar_prefetch = 0 : i64, scratch_operands = 0 : i64, tpu.core_type = #tpu.core_type<tc>, window_params = [{transform_indices = @transform_0, window_bounds = array<i64: 1, 18, 18, 128>}, {pipeline_mode = #tpu.pipeline_mode<synchronous>, transform_indices = @transform_1, window_bounds = array<i64: 9, 128, 128>}, {transform_indices = @transform_2, window_bounds = array<i64: 1, 16, 16, 128>}, {transform_indices = @transform_3, window_bounds = array<i64: 1, 1, 128>}, {transform_indices = @transform_4, window_bounds = array<i64: 1, 1, 128>}]} {
    %c0 = arith.constant 0 : index
    %c0_0 = arith.constant 0 : index
    %c0_1 = arith.constant 0 : index
    %c0_2 = arith.constant 0 : index
    %0 = vector.load %arg1[%c0, %c0_0, %c0_1, %c0_2] : memref<1x18x18x128xbf16, #tpu.memory_space<vmem>>, vector<1x18x18x128xbf16>
    %1 = vector.shape_cast %0 : vector<1x18x18x128xbf16> to vector<18x18x128xbf16>
    %2 = arith.extf %1 : vector<18x18x128xbf16> to vector<18x18x128xf32>
    %cst = arith.constant 0.000000e+00 : f32
    %3 = vector.broadcast %cst : f32 to vector<256x128xf32>
    %4 = vector.extract_strided_slice %2 {offsets = [0, 0, 0], sizes = [16, 16, 128], strides = [1, 1, 1]} : vector<18x18x128xf32> to vector<16x16x128xf32>
    %5 = vector.shape_cast %4 : vector<16x16x128xf32> to vector<256x128xf32>
    %6 = arith.truncf %5 : vector<256x128xf32> to vector<256x128xbf16>
    %c0_3 = arith.constant 0 : index
    %c0_4 = arith.constant 0 : index
    %c0_5 = arith.constant 0 : index
    %7 = vector.load %arg2[%c0_3, %c0_4, %c0_5] : memref<9x128x128xbf16, #tpu.memory_space<vmem>>, vector<1x128x128xbf16>
    %8 = vector.shape_cast %7 : vector<1x128x128xbf16> to vector<128x128xbf16>
    %cst_6 = arith.constant dense<0.000000e+00> : vector<256x128xf32>
    %9 = tpu.matmul %6, %8, %cst_6 {dimension_numbers = #tpu.dot_dimension_numbers<[1], [0], [0], [1], [0, 0, 1, 1], [], []>} : vector<256x128xbf16>, vector<128x128xbf16>, vector<256x128xf32> -> vector<256x128xf32>
    %10 = arith.addf %3, %9 : vector<256x128xf32>
    %11 = vector.extract_strided_slice %2 {offsets = [0, 1, 0], sizes = [16, 16, 128], strides = [1, 1, 1]} : vector<18x18x128xf32> to vector<16x16x128xf32>
    %12 = vector.shape_cast %11 : vector<16x16x128xf32> to vector<256x128xf32>
    %13 = arith.truncf %12 : vector<256x128xf32> to vector<256x128xbf16>
    %c1 = arith.constant 1 : index
    %c0_7 = arith.constant 0 : index
    %c0_8 = arith.constant 0 : index
    %14 = vector.load %arg2[%c1, %c0_7, %c0_8] : memref<9x128x128xbf16, #tpu.memory_space<vmem>>, vector<1x128x128xbf16>
    %15 = vector.shape_cast %14 : vector<1x128x128xbf16> to vector<128x128xbf16>
    %cst_9 = arith.constant dense<0.000000e+00> : vector<256x128xf32>
    %16 = tpu.matmul %13, %15, %cst_9 {dimension_numbers = #tpu.dot_dimension_numbers<[1], [0], [0], [1], [0, 0, 1, 1], [], []>} : vector<256x128xbf16>, vector<128x128xbf16>, vector<256x128xf32> -> vector<256x128xf32>
    %17 = arith.addf %10, %16 : vector<256x128xf32>
    %18 = vector.extract_strided_slice %2 {offsets = [0, 2, 0], sizes = [16, 16, 128], strides = [1, 1, 1]} : vector<18x18x128xf32> to vector<16x16x128xf32>
    %19 = vector.shape_cast %18 : vector<16x16x128xf32> to vector<256x128xf32>
    %20 = arith.truncf %19 : vector<256x128xf32> to vector<256x128xbf16>
    %c2 = arith.constant 2 : index
    %c0_10 = arith.constant 0 : index
    %c0_11 = arith.constant 0 : index
    %21 = vector.load %arg2[%c2, %c0_10, %c0_11] : memref<9x128x128xbf16, #tpu.memory_space<vmem>>, vector<1x128x128xbf16>
    %22 = vector.shape_cast %21 : vector<1x128x128xbf16> to vector<128x128xbf16>
    %cst_12 = arith.constant dense<0.000000e+00> : vector<256x128xf32>
    %23 = tpu.matmul %20, %22, %cst_12 {dimension_numbers = #tpu.dot_dimension_numbers<[1], [0], [0], [1], [0, 0, 1, 1], [], []>} : vector<256x128xbf16>, vector<128x128xbf16>, vector<256x128xf32> -> vector<256x128xf32>
    %24 = arith.addf %17, %23 : vector<256x128xf32>
    %25 = vector.extract_strided_slice %2 {offsets = [1, 0, 0], sizes = [16, 16, 128], strides = [1, 1, 1]} : vector<18x18x128xf32> to vector<16x16x128xf32>
    %26 = vector.shape_cast %25 : vector<16x16x128xf32> to vector<256x128xf32>
    %27 = arith.truncf %26 : vector<256x128xf32> to vector<256x128xbf16>
    %c3 = arith.constant 3 : index
    %c0_13 = arith.constant 0 : index
    %c0_14 = arith.constant 0 : index
    %28 = vector.load %arg2[%c3, %c0_13, %c0_14] : memref<9x128x128xbf16, #tpu.memory_space<vmem>>, vector<1x128x128xbf16>
    %29 = vector.shape_cast %28 : vector<1x128x128xbf16> to vector<128x128xbf16>
    %cst_15 = arith.constant dense<0.000000e+00> : vector<256x128xf32>
    %30 = tpu.matmul %27, %29, %cst_15 {dimension_numbers = #tpu.dot_dimension_numbers<[1], [0], [0], [1], [0, 0, 1, 1], [], []>} : vector<256x128xbf16>, vector<128x128xbf16>, vector<256x128xf32> -> vector<256x128xf32>
    %31 = arith.addf %24, %30 : vector<256x128xf32>
    %32 = vector.extract_strided_slice %2 {offsets = [1, 1, 0], sizes = [16, 16, 128], strides = [1, 1, 1]} : vector<18x18x128xf32> to vector<16x16x128xf32>
    %33 = vector.shape_cast %32 : vector<16x16x128xf32> to vector<256x128xf32>
    %34 = arith.truncf %33 : vector<256x128xf32> to vector<256x128xbf16>
    %c4 = arith.constant 4 : index
    %c0_16 = arith.constant 0 : index
    %c0_17 = arith.constant 0 : index
    %35 = vector.load %arg2[%c4, %c0_16, %c0_17] : memref<9x128x128xbf16, #tpu.memory_space<vmem>>, vector<1x128x128xbf16>
    %36 = vector.shape_cast %35 : vector<1x128x128xbf16> to vector<128x128xbf16>
    %cst_18 = arith.constant dense<0.000000e+00> : vector<256x128xf32>
    %37 = tpu.matmul %34, %36, %cst_18 {dimension_numbers = #tpu.dot_dimension_numbers<[1], [0], [0], [1], [0, 0, 1, 1], [], []>} : vector<256x128xbf16>, vector<128x128xbf16>, vector<256x128xf32> -> vector<256x128xf32>
    %38 = arith.addf %31, %37 : vector<256x128xf32>
    %39 = vector.extract_strided_slice %2 {offsets = [1, 2, 0], sizes = [16, 16, 128], strides = [1, 1, 1]} : vector<18x18x128xf32> to vector<16x16x128xf32>
    %40 = vector.shape_cast %39 : vector<16x16x128xf32> to vector<256x128xf32>
    %41 = arith.truncf %40 : vector<256x128xf32> to vector<256x128xbf16>
    %c5 = arith.constant 5 : index
    %c0_19 = arith.constant 0 : index
    %c0_20 = arith.constant 0 : index
    %42 = vector.load %arg2[%c5, %c0_19, %c0_20] : memref<9x128x128xbf16, #tpu.memory_space<vmem>>, vector<1x128x128xbf16>
    %43 = vector.shape_cast %42 : vector<1x128x128xbf16> to vector<128x128xbf16>
    %cst_21 = arith.constant dense<0.000000e+00> : vector<256x128xf32>
    %44 = tpu.matmul %41, %43, %cst_21 {dimension_numbers = #tpu.dot_dimension_numbers<[1], [0], [0], [1], [0, 0, 1, 1], [], []>} : vector<256x128xbf16>, vector<128x128xbf16>, vector<256x128xf32> -> vector<256x128xf32>
    %45 = arith.addf %38, %44 : vector<256x128xf32>
    %46 = vector.extract_strided_slice %2 {offsets = [2, 0, 0], sizes = [16, 16, 128], strides = [1, 1, 1]} : vector<18x18x128xf32> to vector<16x16x128xf32>
    %47 = vector.shape_cast %46 : vector<16x16x128xf32> to vector<256x128xf32>
    %48 = arith.truncf %47 : vector<256x128xf32> to vector<256x128xbf16>
    %c6 = arith.constant 6 : index
    %c0_22 = arith.constant 0 : index
    %c0_23 = arith.constant 0 : index
    %49 = vector.load %arg2[%c6, %c0_22, %c0_23] : memref<9x128x128xbf16, #tpu.memory_space<vmem>>, vector<1x128x128xbf16>
    %50 = vector.shape_cast %49 : vector<1x128x128xbf16> to vector<128x128xbf16>
    %cst_24 = arith.constant dense<0.000000e+00> : vector<256x128xf32>
    %51 = tpu.matmul %48, %50, %cst_24 {dimension_numbers = #tpu.dot_dimension_numbers<[1], [0], [0], [1], [0, 0, 1, 1], [], []>} : vector<256x128xbf16>, vector<128x128xbf16>, vector<256x128xf32> -> vector<256x128xf32>
    %52 = arith.addf %45, %51 : vector<256x128xf32>
    %53 = vector.extract_strided_slice %2 {offsets = [2, 1, 0], sizes = [16, 16, 128], strides = [1, 1, 1]} : vector<18x18x128xf32> to vector<16x16x128xf32>
    %54 = vector.shape_cast %53 : vector<16x16x128xf32> to vector<256x128xf32>
    %55 = arith.truncf %54 : vector<256x128xf32> to vector<256x128xbf16>
    %c7 = arith.constant 7 : index
    %c0_25 = arith.constant 0 : index
    %c0_26 = arith.constant 0 : index
    %56 = vector.load %arg2[%c7, %c0_25, %c0_26] : memref<9x128x128xbf16, #tpu.memory_space<vmem>>, vector<1x128x128xbf16>
    %57 = vector.shape_cast %56 : vector<1x128x128xbf16> to vector<128x128xbf16>
    %cst_27 = arith.constant dense<0.000000e+00> : vector<256x128xf32>
    %58 = tpu.matmul %55, %57, %cst_27 {dimension_numbers = #tpu.dot_dimension_numbers<[1], [0], [0], [1], [0, 0, 1, 1], [], []>} : vector<256x128xbf16>, vector<128x128xbf16>, vector<256x128xf32> -> vector<256x128xf32>
    %59 = arith.addf %52, %58 : vector<256x128xf32>
    %60 = vector.extract_strided_slice %2 {offsets = [2, 2, 0], sizes = [16, 16, 128], strides = [1, 1, 1]} : vector<18x18x128xf32> to vector<16x16x128xf32>
    %61 = vector.shape_cast %60 : vector<16x16x128xf32> to vector<256x128xf32>
    %62 = arith.truncf %61 : vector<256x128xf32> to vector<256x128xbf16>
    %c8 = arith.constant 8 : index
    %c0_28 = arith.constant 0 : index
    %c0_29 = arith.constant 0 : index
    %63 = vector.load %arg2[%c8, %c0_28, %c0_29] : memref<9x128x128xbf16, #tpu.memory_space<vmem>>, vector<1x128x128xbf16>
    %64 = vector.shape_cast %63 : vector<1x128x128xbf16> to vector<128x128xbf16>
    %cst_30 = arith.constant dense<0.000000e+00> : vector<256x128xf32>
    %65 = tpu.matmul %62, %64, %cst_30 {dimension_numbers = #tpu.dot_dimension_numbers<[1], [0], [0], [1], [0, 0, 1, 1], [], []>} : vector<256x128xbf16>, vector<128x128xbf16>, vector<256x128xf32> -> vector<256x128xf32>
    %66 = arith.addf %59, %65 : vector<256x128xf32>
    %67 = vector.shape_cast %66 : vector<256x128xf32> to vector<1x16x16x128xf32>
    %c0_31 = arith.constant 0 : index
    %c0_32 = arith.constant 0 : index
    %c0_33 = arith.constant 0 : index
    %c0_34 = arith.constant 0 : index
    %68 = vector.load %arg3[%c0_31, %c0_32, %c0_33, %c0_34] : memref<1x16x16x128xf32, #tpu.memory_space<vmem>>, vector<1x16x16x128xf32>
    tpu.vector_store %arg3[%c0_31, %c0_32, %c0_33, %c0_34], %67 {strides = array<i32>} : memref<1x16x16x128xf32, #tpu.memory_space<vmem>>, vector<1x16x16x128xf32>,
    %cst_35 = arith.constant dense<0.000000e+00> : vector<128xf32>
    %69 = vector.multi_reduction <add>, %66, %cst_35 [0] : vector<256x128xf32> to vector<128xf32>
    %70 = vector.shape_cast %69 : vector<128xf32> to vector<1x128xf32>
    %c0_36 = arith.constant 0 : index
    %c0_37 = arith.constant 0 : index
    %c0_38 = arith.constant 0 : index
    %71 = vector.load %arg4[%c0_36, %c0_37, %c0_38] : memref<1x1x128xf32, #tpu.memory_space<vmem>>, vector<1x1x128xf32>
    %72 = vector.shape_cast %71 : vector<1x1x128xf32> to vector<1x128xf32>
    %73 = vector.shape_cast %70 : vector<1x128xf32> to vector<1x1x128xf32>
    tpu.vector_store %arg4[%c0_36, %c0_37, %c0_38], %73 {strides = array<i32>} : memref<1x1x128xf32, #tpu.memory_space<vmem>>, vector<1x1x128xf32>,
    %74 = arith.mulf %66, %66 : vector<256x128xf32>
    %cst_39 = arith.constant dense<0.000000e+00> : vector<128xf32>
    %75 = vector.multi_reduction <add>, %74, %cst_39 [0] : vector<256x128xf32> to vector<128xf32>
    %76 = vector.shape_cast %75 : vector<128xf32> to vector<1x128xf32>
    %c0_40 = arith.constant 0 : index
    %c0_41 = arith.constant 0 : index
    %c0_42 = arith.constant 0 : index
    %77 = vector.load %arg5[%c0_40, %c0_41, %c0_42] : memref<1x1x128xf32, #tpu.memory_space<vmem>>, vector<1x1x128xf32>
    %78 = vector.shape_cast %77 : vector<1x1x128xf32> to vector<1x128xf32>
    %79 = vector.shape_cast %76 : vector<1x128xf32> to vector<1x1x128xf32>
    tpu.vector_store %arg5[%c0_40, %c0_41, %c0_42], %79 {strides = array<i32>} : memref<1x1x128xf32, #tpu.memory_space<vmem>>, vector<1x1x128xf32>,
    return
  }
  func.func @transform_0(%arg0: i32) -> (i32, i32, i32, i32) {
    %c0_i32 = arith.constant 0 : i32
    %c0_i32_0 = arith.constant 0 : i32
    %c0_i32_1 = arith.constant 0 : i32
    %c0_i32_2 = arith.constant 0 : i32
    return %arg0, %c0_i32, %c0_i32_0, %c0_i32_1 : i32, i32, i32, i32
  }
  func.func @transform_1(%arg0: i32) -> (i32, i32, i32) {
    %c0_i32 = arith.constant 0 : i32
    %c0_i32_0 = arith.constant 0 : i32
    %c0_i32_1 = arith.constant 0 : i32
    %c0_i32_2 = arith.constant 0 : i32
    return %c0_i32, %c0_i32_0, %c0_i32_1 : i32, i32, i32
  }
  func.func @transform_2(%arg0: i32) -> (i32, i32, i32, i32) {
    %c0_i32 = arith.constant 0 : i32
    %c0_i32_0 = arith.constant 0 : i32
    %c0_i32_1 = arith.constant 0 : i32
    %c0_i32_2 = arith.constant 0 : i32
    return %arg0, %c0_i32, %c0_i32_0, %c0_i32_1 : i32, i32, i32, i32
  }
  func.func @transform_3(%arg0: i32) -> (i32, i32, i32) {
    %c0_i32 = arith.constant 0 : i32
    %c0_i32_0 = arith.constant 0 : i32
    %c0_i32_1 = arith.constant 0 : i32
    return %arg0, %c0_i32, %c0_i32_0 : i32, i32, i32
  }
  func.func @transform_4(%arg0: i32) -> (i32, i32, i32) {
    %c0_i32 = arith.constant 0 : i32
    %c0_i32_0 = arith.constant 0 : i32
    %c0_i32_1 = arith.constant 0 : i32
    return %arg0, %c0_i32, %c0_i32_0 : i32, i32, i32
  }
}

</mosaic_0001>

<llo_original>
// kernel: tpu_custom_call.1
$region0: #{tpu_custom_call.1}
  #allocation0 [shape = 'u32[]', space=smem, size = 0x4, offset = 0x4, fixed_abs, tag = 'smem constant byte address 0x4 - core index']
  #allocation1 [shape = 'u32[72,128]{1,0:T(1,128)}', space=vmem, size = 0x9000, scoped, tag = 'internal scratch']
  %s0 = inlined_call_operand.vmem [shape: bf16[2,18,18,128], index: 0, kind: input, shape index: {}]
  %s1 = inlined_call_operand.vmem [shape: bf16[9,128,128], index: 1, kind: input, shape index: {}]
  %s2 = inlined_call_operand.hbm [shape: f32[2,16,16,128], index: 2, kind: output, shape index: {0}]
  %s3 = inlined_call_operand.hbm [shape: f32[2,1,128], index: 3, kind: output, shape index: {1}]
  %s4 = inlined_call_operand.hbm [shape: f32[2,1,128], index: 4, kind: output, shape index: {2}]
  %5 = xla_tuple %s2, %s3, %s4
  %s6 = sld [smem:[#allocation0]]
  $region57: #{tpu_custom_call.1} parent=0
    _
  %s8 = ssub.s32 1, %s6
  %s9 = scalar_select 0, %s8, %s6
  $region1: #{tpu_custom_call.1} parent=0
    #allocation2 [shape = 'u8[262144]{0}', space=vmem, size = 0x40000, scoped, tag = 'output window, operand 0']
    #allocation3 [shape = 's32[2]{0}', space=sflag, size = 0x8, scoped, tag = 'scoped memory for tpu_custom_call.1']
    #allocation4 [shape = 'u8[1024]{0}', space=vmem, size = 0x400, scoped, tag = 'output window, operand 1']
    #allocation5 [shape = 's32[2]{0}', space=sflag, size = 0x8, scoped, tag = 'scoped memory for tpu_custom_call.1']
    #allocation6 [shape = 'u8[1024]{0}', space=vmem, size = 0x400, scoped, tag = 'output window, operand 2']
    %10 = vsyncpa [#allocation3], 0
    %s11 = scalar_lea.sflag [#allocation3], 1
    %12 = vsyncpa %s11, 0
    %13 = vsyncpa [#allocation5], 0
    %s14 = scalar_lea.sflag [#allocation5], 1
    %15 = vsyncpa %s14, 0
    loop: start=0, step=1, limit=4
    $region2: #{tpu_custom_call.1} parent=1 // loop_pre_header
      _
    $region3: #{tpu_custom_call.1} parent=1 // loop_header
      %s17 = sphi 0, %s21
      %p18 = scmp.ge.s32.totalorder %s17, 4
      %s27 = sphi 0, %s29
      %s30 = sphi 0, %s27
      %s31 = sphi 0, %s30
      %s47 = sphi 0, %s31
      %s51 = sphi 0, %s51
      %s53 = sphi 0, %s51
      %s54 = sphi 0, %s53
      %s68 = sphi 0, %s54
      %s74 = sphi 0, %s76
      %s77 = sphi 0, %s74
      %s78 = sphi 0, %s77
      %s94 = sphi 0, %s78
      %s100 = sphi 0, %s102
      %s103 = sphi 0, %s100
      %s104 = sphi 0, %s103
      %s120 = sphi 0, %s104
      %s126 = sphi 0, %s128
      %s129 = sphi 0, %s126
      %s130 = sphi 0, %s129
      %s146 = sphi 0, %s130
    $region4: #{tpu_custom_call.1} parent=1 // loop_header_branch
      %20 = sbr.rel (%p18) target = $region8
    $region5: #{tpu_custom_call.1} parent=1 // loop_body
      %s22 = ssub.s32 %s17, 1
      %s23 = ssub.s32 %s17, 2
      %s24 = sadd.s32 %s17, 1
      %s25 = ssub.s32 %s17, %s24
      %p26 = scmp.eq.s32.totalorder %s25, 0
      %s28 = sadd.s32 %s27, 1
      %s29 = scalar_select %p26, %s27, %s28
      %p32 = pneg %p26
      %p33 = scmp.eq.s32.totalorder %s17, 1
      %p34 = por %p32, %p33
      %p35 = scmp.ne.s32.totalorder %s27, %s30
      %p36 = scmp.eq.s32.totalorder %s17, 0
      %p37 = por %p35, %p36
      %p38 = scmp.ne.s32.totalorder %s27, %s30
      %p39 = scmp.eq.s32.totalorder %s22, 1
      %p40 = por %p38, %p39
      %p41 = scmp.ne.s32.totalorder %s30, %s31
      %p42 = scmp.eq.s32.totalorder %s22, 0
      %p43 = por %p41, %p42
      %p44 = scmp.ne.s32.totalorder %s30, %s31
      %p45 = scmp.eq.s32.totalorder %s23, 1
      %p46 = por %p44, %p45
      %p48 = scmp.ne.s32.totalorder %s31, %s47
      %p49 = scmp.eq.s32.totalorder %s23, 0
      %p50 = por %p48, %p49
      %s52 = sadd.s32 %s51, 1
      %p55 = scmp.eq.s32.totalorder %s17, 1
      %p56 = scmp.ne.s32.totalorder %s51, %s53
      %p57 = scmp.eq.s32.totalorder %s17, 0
      %p58 = por %p56, %p57
      %p59 = scmp.ne.s32.totalorder %s51, %s53
      %p60 = scmp.eq.s32.totalorder %s22, 1
      %p61 = por %p59, %p60
      %p62 = scmp.ne.s32.totalorder %s53, %s54
      %p63 = scmp.eq.s32.totalorder %s22, 0
      %p64 = por %p62, %p63
      %p65 = scmp.ne.s32.totalorder %s53, %s54
      %p66 = scmp.eq.s32.totalorder %s23, 1
      %p67 = por %p65, %p66
      %p69 = scmp.ne.s32.totalorder %s54, %s68
      %p70 = scmp.eq.s32.totalorder %s23, 0
      %p71 = por %p69, %p70
      %s72 = ssub.s32 %s17, %s24
      %p73 = scmp.eq.s32.totalorder %s72, 0
      %s75 = sadd.s32 %s74, 1
      %s76 = scalar_select %p73, %s74, %s75
      %p79 = pneg %p73
      %p80 = scmp.eq.s32.totalorder %s17, 1
      %p81 = por %p79, %p80
      %p82 = scmp.ne.s32.totalorder %s74, %s77
      %p83 = scmp.eq.s32.totalorder %s17, 0
      %p84 = por %p82, %p83
      %p85 = scmp.ne.s32.totalorder %s74, %s77
      %p86 = scmp.eq.s32.totalorder %s22, 1
      %p87 = por %p85, %p86
      %p88 = scmp.ne.s32.totalorder %s77, %s78
      %p89 = scmp.eq.s32.totalorder %s22, 0
      %p90 = por %p88, %p89
      %p91 = scmp.ne.s32.totalorder %s77, %s78
      %p92 = scmp.eq.s32.totalorder %s23, 1
      %p93 = por %p91, %p92
      %p95 = scmp.ne.s32.totalorder %s78, %s94
      %p96 = scmp.eq.s32.totalorder %s23, 0
      %p97 = por %p95, %p96
      %s98 = ssub.s32 %s17, %s24
      %p99 = scmp.eq.s32.totalorder %s98, 0
      %s101 = sadd.s32 %s100, 1
      %s102 = scalar_select %p99, %s100, %s101
      %p105 = pneg %p99
      %p106 = scmp.eq.s32.totalorder %s17, 1
      %p107 = por %p105, %p106
      %p108 = scmp.ne.s32.totalorder %s100, %s103
      %p109 = scmp.eq.s32.totalorder %s17, 0
      %p110 = por %p108, %p109
      %p111 = scmp.ne.s32.totalorder %s100, %s103
      %p112 = scmp.eq.s32.totalorder %s22, 1
      %p113 = por %p111, %p112
      %p114 = scmp.ne.s32.totalorder %s103, %s104
      %p115 = scmp.eq.s32.totalorder %s22, 0
      %p116 = por %p114, %p115
      %p117 = scmp.ne.s32.totalorder %s103, %s104
      %p118 = scmp.eq.s32.totalorder %s23, 1
      %p119 = por %p117, %p118
      %p121 = scmp.ne.s32.totalorder %s104, %s120
      %p122 = scmp.eq.s32.totalorder %s23, 0
      %p123 = por %p121, %p122
      %s124 = ssub.s32 %s17, %s24
      %p125 = scmp.eq.s32.totalorder %s124, 0
      %s127 = sadd.s32 %s126, 1
      %s128 = scalar_select %p125, %s126, %s127
      %p131 = pneg %p125
      %p132 = scmp.eq.s32.totalorder %s17, 1
      %p133 = por %p131, %p132
      %p134 = scmp.ne.s32.totalorder %s126, %s129
      %p135 = scmp.eq.s32.totalorder %s17, 0
      %p136 = por %p134, %p135
      %p137 = scmp.ne.s32.totalorder %s126, %s129
      %p138 = scmp.eq.s32.totalorder %s22, 1
      %p139 = por %p137, %p138
      %p140 = scmp.ne.s32.totalorder %s129, %s130
      %p141 = scmp.eq.s32.totalorder %s22, 0
      %p142 = por %p140, %p141
      %p143 = scmp.ne.s32.totalorder %s129, %s130
      %p144 = scmp.eq.s32.totalorder %s23, 1
      %p145 = por %p143, %p144
      %p147 = scmp.ne.s32.totalorder %s130, %s146
      %p148 = scmp.eq.s32.totalorder %s23, 0
      %p149 = por %p147, %p148
      %p150 = scmp.le.s32.totalorder 1, %s17
      %p151 = scmp.lt.s32.totalorder %s17, 3
      %p152 = pnand %p150, %p151
      %p153 = pneg %p152
      // Predicated region
      $region9: #{tpu_custom_call.1} parent=5 // pred_check
        _
      $region10: #{tpu_custom_call.1} parent=5 // pred_check_branch
        %155 = sbr.rel (%p152) target = $region12
      $region11: #{tpu_custom_call.1} parent=5 // pred_region
        %s156 = ssub.s32 %s17, 1
        // Predicated region
        $region13: #{tpu_custom_call.1} parent=11 // pred_check
          %p157 = pneg %p64
        $region14: #{tpu_custom_call.1} parent=11 // pred_check_branch
          %159 = sbr.rel (%p157) target = $region16
        $region15: #{tpu_custom_call.1} parent=11 // pred_region
          _
        $region16: #{tpu_custom_call.1} parent=11 // pred_fallthru
          _
      $region12: #{tpu_custom_call.1} parent=5 // pred_fallthru
        _
      %p160 = scmp.lt.s32.totalorder %s17, 2
      // Predicated region
      $region17: #{tpu_custom_call.1} parent=5 // pred_check
        %p161 = pneg %p160
      $region18: #{tpu_custom_call.1} parent=5 // pred_check_branch
        %163 = sbr.rel (%p161) target = $region20
      $region19: #{tpu_custom_call.1} parent=5 // pred_region
        // Predicated region
        $region21: #{tpu_custom_call.1} parent=19 // pred_check
          %p164 = pneg %p37
        $region22: #{tpu_custom_call.1} parent=19 // pred_check_branch
          %166 = sbr.rel (%p164) target = $region24
        $region23: #{tpu_custom_call.1} parent=19 // pred_region
          %p167 = scmp.lt.s32.totalorder %s17, 1
          %s168 = scalar_select %p167, %s17, 1
          %s169 = smul.addr %s168, 54
          %s170 = smul.addr %s169, 4
          %s171 = scalar_lea.vmem %s0, %s170
        $region24: #{tpu_custom_call.1} parent=19 // pred_fallthru
          _
      $region20: #{tpu_custom_call.1} parent=5 // pred_fallthru
        _
      %p172 = scmp.le.s32.totalorder 1, %s17
      %p173 = scmp.lt.s32.totalorder %s17, 3
      %p174 = pnand %p172, %p173
      %p175 = pneg %p174
      // Predicated region
      $region25: #{tpu_custom_call.1} parent=5 // pred_check
        _
      $region26: #{tpu_custom_call.1} parent=5 // pred_check_branch
        %177 = sbr.rel (%p174) target = $region28
      $region27: #{tpu_custom_call.1} parent=5 // pred_region
        %s178 = ssub.s32 %s17, 1
        %p179 = scmp.lt.s32.totalorder %s22, 1
        %s180 = scalar_select %p179, %s22, 1
        %s181 = smul.addr %s180, 54
        %s182 = smul.addr %s181, 4
        %s183 = scalar_lea.vmem %s0, %s182
        %p184 = pneg %p43
        %p185 = pneg %p40
        %p186 = pneg %p64
        %p187 = pneg %p61
        %p188 = pneg %p90
        %p189 = pneg %p87
        %s190 = sand.u32 %s77, 1
        %s191 = scalar_lea.sflag [#allocation3], %s190
        %s192 = sand.u32 %s77, 1
        %s193 = smul.addr %s192, 256
        %s194 = scalar_lea.vmem [#allocation2], %s193
        %p195 = pneg %p116
        %p196 = pneg %p113
        %s197 = sand.u32 %s22, 1
        %s198 = scalar_lea.sflag [#allocation5], %s197
        %s199 = sand.u32 %s103, 1
        %s200 = scalar_lea.vmem [#allocation4], %s199
        %p201 = pneg %p142
        %p202 = pneg %p139
        %s203 = sand.u32 %s22, 1
        %s204 = scalar_lea.sflag [#allocation5], %s203
        %s205 = sand.u32 %s129, 1
        %s206 = scalar_lea.vmem [#allocation6], %s205
        %p207 = scmp.lt.s32.totalorder %s22, 1
        %s208 = scalar_select %p207, %s22, 1
        %s209 = smul.addr %s208, 54
        %s210 = smul.addr %s209, 4
        %s211 = scalar_lea.vmem %s0, %s210
        %v212 = vld [vmem:[%s211] sm:$0xf]
        %v213 = vld [vmem:[%s211 + $0x4] sm:$0xf]
        %v214 = vld [vmem:[%s211 + $0x8] sm:$0x1]
        %v215 = vld [vmem:[%s211 + $0xc] sm:$0xf]
        %v216 = vld [vmem:[%s211 + $0x10] sm:$0xf]
        %v217 = vld [vmem:[%s211 + $0x14] sm:$0x1]
        %v218 = vld [vmem:[%s211 + $0x18] sm:$0xf]
        %v219 = vld [vmem:[%s211 + $0x1c] sm:$0xf]
        %v220 = vld [vmem:[%s211 + $0x20] sm:$0x1]
        %v221 = vld [vmem:[%s211 + $0x24] sm:$0xf]
        %v222 = vld [vmem:[%s211 + $0x28] sm:$0xf]
        %v223 = vld [vmem:[%s211 + $0x2c] sm:$0x1]
        %v224 = vld [vmem:[%s211 + $0x30] sm:$0xf]
        %v225 = vld [vmem:[%s211 + $0x34] sm:$0xf]
        %v226 = vld [vmem:[%s211 + $0x38] sm:$0x1]
        %v227 = vld [vmem:[%s211 + $0x3c] sm:$0xf]
        %v228 = vld [vmem:[%s211 + $0x40] sm:$0xf]
        %v229 = vld [vmem:[%s211 + $0x44] sm:$0x1]
        %v230 = vld [vmem:[%s211 + $0x48] sm:$0xf]
        %v231 = vld [vmem:[%s211 + $0x4c] sm:$0xf]
        %v232 = vld [vmem:[%s211 + $0x50] sm:$0x1]
        %v233 = vld [vmem:[%s211 + $0x54] sm:$0xf]
        %v234 = vld [vmem:[%s211 + $0x58] sm:$0xf]
        %v235 = vld [vmem:[%s211 + $0x5c] sm:$0x1]
        %v236 = vld [vmem:[%s211 + $0x60] sm:$0xf]
        %v237 = vld [vmem:[%s211 + $0x64] sm:$0xf]
        %v238 = vld [vmem:[%s211 + $0x68] sm:$0x1]
        %v239 = vld [vmem:[%s211 + $0x6c] sm:$0xf]
        %v240 = vld [vmem:[%s211 + $0x70] sm:$0xf]
        %v241 = vld [vmem:[%s211 + $0x74] sm:$0x1]
        %v242 = vld [vmem:[%s211 + $0x78] sm:$0xf]
        %v243 = vld [vmem:[%s211 + $0x7c] sm:$0xf]
        %v244 = vld [vmem:[%s211 + $0x80] sm:$0x1]
        %v245 = vld [vmem:[%s211 + $0x84] sm:$0xf]
        %v246 = vld [vmem:[%s211 + $0x88] sm:$0xf]
        %v247 = vld [vmem:[%s211 + $0x8c] sm:$0x1]
        %v248 = vld [vmem:[%s211 + $0x90] sm:$0xf]
        %v249 = vld [vmem:[%s211 + $0x94] sm:$0xf]
        %v250 = vld [vmem:[%s211 + $0x98] sm:$0x1]
        %v251 = vld [vmem:[%s211 + $0x9c] sm:$0xf]
        %v252 = vld [vmem:[%s211 + $0xa0] sm:$0xf]
        %v253 = vld [vmem:[%s211 + $0xa4] sm:$0x1]
        %v254 = vld [vmem:[%s211 + $0xa8] sm:$0xf]
        %v255 = vld [vmem:[%s211 + $0xac] sm:$0xf]
        %v256 = vld [vmem:[%s211 + $0xb0] sm:$0x1]
        %v257 = vld [vmem:[%s211 + $0xb4] sm:$0xf]
        %v258 = vld [vmem:[%s211 + $0xb8] sm:$0xf]
        %v259 = vld [vmem:[%s211 + $0xbc] sm:$0x1]
        %v260 = vld [vmem:[%s211 + $0xc0] sm:$0xf]
        %v261 = vld [vmem:[%s211 + $0xc4] sm:$0xf]
        %v262 = vld [vmem:[%s211 + $0xc8] sm:$0x1]
        %v263 = vld [vmem:[%s211 + $0xcc] sm:$0xf]
        %v264 = vld [vmem:[%s211 + $0xd0] sm:$0xf]
        %v265 = vld [vmem:[%s211 + $0xd4] sm:$0x1]
        %v266 = vunpack.c.l.bf16 %v212
        %v267 = vunpack.c.l.bf16 %v213
        %v268 = vunpack.c.l.bf16 %v214
        %v269 = vunpack.c.l.bf16 %v215
        %v270 = vunpack.c.l.bf16 %v216
        %v271 = vunpack.c.l.bf16 %v217
        %v272 = vunpack.c.l.bf16 %v218
        %v273 = vunpack.c.l.bf16 %v219
        %v274 = vunpack.c.l.bf16 %v220
        %v275 = vunpack.c.l.bf16 %v221
        %v276 = vunpack.c.l.bf16 %v222
        %v277 = vunpack.c.l.bf16 %v223
        %v278 = vunpack.c.l.bf16 %v224
        %v279 = vunpack.c.l.bf16 %v225
        %v280 = vunpack.c.l.bf16 %v226
        %v281 = vunpack.c.l.bf16 %v227
        %v282 = vunpack.c.l.bf16 %v228
        %v283 = vunpack.c.l.bf16 %v229
        %v284 = vunpack.c.l.bf16 %v230
        %v285 = vunpack.c.l.bf16 %v231
        %v286 = vunpack.c.l.bf16 %v232
        %v287 = vunpack.c.l.bf16 %v233
        %v288 = vunpack.c.l.bf16 %v234
        %v289 = vunpack.c.l.bf16 %v235
        %v290 = vunpack.c.l.bf16 %v236
        %v291 = vunpack.c.l.bf16 %v237
        %v292 = vunpack.c.l.bf16 %v238
        %v293 = vunpack.c.l.bf16 %v239
        %v294 = vunpack.c.l.bf16 %v240
        %v295 = vunpack.c.l.bf16 %v241
        %v296 = vunpack.c.l.bf16 %v242
        %v297 = vunpack.c.l.bf16 %v243
        %v298 = vunpack.c.l.bf16 %v244
        %v299 = vunpack.c.l.bf16 %v245
        %v300 = vunpack.c.l.bf16 %v246
        %v301 = vunpack.c.l.bf16 %v247
        %v302 = vunpack.c.l.bf16 %v248
        %v303 = vunpack.c.l.bf16 %v249
        %v304 = vunpack.c.l.bf16 %v250
        %v305 = vunpack.c.l.bf16 %v251
        %v306 = vunpack.c.l.bf16 %v252
        %v307 = vunpack.c.l.bf16 %v253
        %v308 = vunpack.c.l.bf16 %v254
        %v309 = vunpack.c.l.bf16 %v255
        %v310 = vunpack.c.l.bf16 %v256
        %v311 = vunpack.c.l.bf16 %v257
        %v312 = vunpack.c.l.bf16 %v258
        %v313 = vunpack.c.l.bf16 %v259
        %v314 = vunpack.c.l.bf16 %v260
        %v315 = vunpack.c.l.bf16 %v261
        %v316 = vunpack.c.l.bf16 %v262
        %v317 = vunpack.c.l.bf16 %v263
        %v318 = vunpack.c.l.bf16 %v264
        %v319 = vunpack.c.l.bf16 %v265
        %v320 = vpack.c.bf16 %v267, %v266
        %v321 = vpack.c.bf16 %v270, %v269
        %v322 = vpack.c.bf16 %v273, %v272
        %v323 = vpack.c.bf16 %v276, %v275
        %v324 = vpack.c.bf16 %v279, %v278
        %v325 = vpack.c.bf16 %v282, %v281
        %v326 = vpack.c.bf16 %v285, %v284
        %v327 = vpack.c.bf16 %v288, %v287
        %v328 = vpack.c.bf16 %v291, %v290
        %v329 = vpack.c.bf16 %v294, %v293
        %v330 = vpack.c.bf16 %v297, %v296
        %v331 = vpack.c.bf16 %v300, %v299
        %v332 = vpack.c.bf16 %v303, %v302
        %v333 = vpack.c.bf16 %v306, %v305
        %v334 = vpack.c.bf16 %v309, %v308
        %v335 = vpack.c.bf16 %v312, %v311
        %v336 = vld [vmem:[%s1] sm:$0xf]
        %v337 = vld [vmem:[%s1 + $0x4] sm:$0xf]
        %v338 = vld [vmem:[%s1 + $0x8] sm:$0xf]
        %v339 = vld [vmem:[%s1 + $0xc] sm:$0xf]
        %v340 = vld [vmem:[%s1 + $0x10] sm:$0xf]
        %v341 = vld [vmem:[%s1 + $0x14] sm:$0xf]
        %v342 = vld [vmem:[%s1 + $0x18] sm:$0xf]
        %v343 = vld [vmem:[%s1 + $0x1c] sm:$0xf]
        %v344 = vld [vmem:[%s1 + $0x20] sm:$0xf]
        %v345 = vld [vmem:[%s1 + $0x24] sm:$0xf]
        %v346 = vld [vmem:[%s1 + $0x28] sm:$0xf]
        %v347 = vld [vmem:[%s1 + $0x2c] sm:$0xf]
        %v348 = vld [vmem:[%s1 + $0x30] sm:$0xf]
        %v349 = vld [vmem:[%s1 + $0x34] sm:$0xf]
        %v350 = vld [vmem:[%s1 + $0x38] sm:$0xf]
        %v351 = vld [vmem:[%s1 + $0x3c] sm:$0xf]
        %vm400 = vcmask 1046528
        %v401 = vrot.slane %v266, 1
        %v402 = vrot.slane %v267, 1
        %v403 = vsel %vm400, %v401, %v402
        %v404 = vrot.slane %v268, 1
        %v405 = vsel %vm400, %v402, %v404
        %v406 = vrot.slane %v269, 1
        %v407 = vrot.slane %v270, 1
        %v408 = vsel %vm400, %v406, %v407
        %v409 = vrot.slane %v271, 1
        %v410 = vsel %vm400, %v407, %v409
        %v411 = vrot.slane %v272, 1
        %v412 = vrot.slane %v273, 1
        %v413 = vsel %vm400, %v411, %v412
        %v414 = vrot.slane %v274, 1
        %v415 = vsel %vm400, %v412, %v414
        %v416 = vrot.slane %v275, 1
        %v417 = vrot.slane %v276, 1
        %v418 = vsel %vm400, %v416, %v417
        %v419 = vrot.slane %v277, 1
        %v420 = vsel %vm400, %v417, %v419
        %v421 = vrot.slane %v278, 1
        %v422 = vrot.slane %v279, 1
        %v423 = vsel %vm400, %v421, %v422
        %v424 = vrot.slane %v280, 1
        %v425 = vsel %vm400, %v422, %v424
        %v426 = vrot.slane %v281, 1
        %v427 = vrot.slane %v282, 1
        %v428 = vsel %vm400, %v426, %v427
        %v429 = vrot.slane %v283, 1
        %v430 = vsel %vm400, %v427, %v429
        %v431 = vrot.slane %v284, 1
        %v432 = vrot.slane %v285, 1
        %v433 = vsel %vm400, %v431, %v432
        %v434 = vrot.slane %v286, 1
        %v435 = vsel %vm400, %v432, %v434
        %v436 = vrot.slane %v287, 1
        %v437 = vrot.slane %v288, 1
        %v438 = vsel %vm400, %v436, %v437
        %v439 = vrot.slane %v289, 1
        %v440 = vsel %vm400, %v437, %v439
        %v441 = vrot.slane %v290, 1
        %v442 = vrot.slane %v291, 1
        %v443 = vsel %vm400, %v441, %v442
        %v444 = vrot.slane %v292, 1
        %v445 = vsel %vm400, %v442, %v444
        %v446 = vrot.slane %v293, 1
        %v447 = vrot.slane %v294, 1
        %v448 = vsel %vm400, %v446, %v447
        %v449 = vrot.slane %v295, 1
        %v450 = vsel %vm400, %v447, %v449
        %v451 = vrot.slane %v296, 1
        %v452 = vrot.slane %v297, 1
        %v453 = vsel %vm400, %v451, %v452
        %v454 = vrot.slane %v298, 1
        %v455 = vsel %vm400, %v452, %v454
        %v456 = vrot.slane %v299, 1
        %v457 = vrot.slane %v300, 1
        %v458 = vsel %vm400, %v456, %v457
        %v459 = vrot.slane %v301, 1
        %v460 = vsel %vm400, %v457, %v459
        %v461 = vrot.slane %v302, 1
        %v462 = vrot.slane %v303, 1
        %v463 = vsel %vm400, %v461, %v462
        %v464 = vrot.slane %v304, 1
        %v465 = vsel %vm400, %v462, %v464
        %v466 = vrot.slane %v305, 1
        %v467 = vrot.slane %v306, 1
        %v468 = vsel %vm400, %v466, %v467
        %v469 = vrot.slane %v307, 1
        %v470 = vsel %vm400, %v467, %v469
        %v471 = vrot.slane %v308, 1
        %v472 = vrot.slane %v309, 1
        %v473 = vsel %vm400, %v471, %v472
        %v474 = vrot.slane %v310, 1
        %v475 = vsel %vm400, %v472, %v474
        %v476 = vrot.slane %v311, 1
        %v477 = vrot.slane %v312, 1
        %v478 = vsel %vm400, %v476, %v477
        %v479 = vrot.slane %v313, 1
        %v480 = vsel %vm400, %v477, %v479
        %v513 = vpack.c.bf16 %v405, %v403
        %v514 = vpack.c.bf16 %v410, %v408
        %v515 = vpack.c.bf16 %v415, %v413
        %v516 = vpack.c.bf16 %v420, %v418
        %v517 = vpack.c.bf16 %v425, %v423
        %v518 = vpack.c.bf16 %v430, %v428
        %v519 = vpack.c.bf16 %v435, %v433
        %v520 = vpack.c.bf16 %v440, %v438
        %v521 = vpack.c.bf16 %v445, %v443
        %v522 = vpack.c.bf16 %v450, %v448
        %v523 = vpack.c.bf16 %v455, %v453
        %v524 = vpack.c.bf16 %v460, %v458
        %v525 = vpack.c.bf16 %v465, %v463
        %v526 = vpack.c.bf16 %v470, %v468
        %v527 = vpack.c.bf16 %v475, %v473
        %v528 = vpack.c.bf16 %v480, %v478
        %s529 = scalar_lea.vmem %s1, 64
        %v530 = vld [vmem:[%s529] sm:$0xf]
        %v531 = vld [vmem:[%s529 + $0x4] sm:$0xf]
        %v532 = vld [vmem:[%s529 + $0x8] sm:$0xf]
        %v533 = vld [vmem:[%s529 + $0xc] sm:$0xf]
        %v534 = vld [vmem:[%s529 + $0x10] sm:$0xf]
        %v535 = vld [vmem:[%s529 + $0x14] sm:$0xf]
        %v536 = vld [vmem:[%s529 + $0x18] sm:$0xf]
        %v537 = vld [vmem:[%s529 + $0x1c] sm:$0xf]
        %v538 = vld [vmem:[%s529 + $0x20] sm:$0xf]
        %v539 = vld [vmem:[%s529 + $0x24] sm:$0xf]
        %v540 = vld [vmem:[%s529 + $0x28] sm:$0xf]
        %v541 = vld [vmem:[%s529 + $0x2c] sm:$0xf]
        %v542 = vld [vmem:[%s529 + $0x30] sm:$0xf]
        %v543 = vld [vmem:[%s529 + $0x34] sm:$0xf]
        %v544 = vld [vmem:[%s529 + $0x38] sm:$0xf]
        %v545 = vld [vmem:[%s529 + $0x3c] sm:$0xf]
        %v562 = vunpack.c.l.b16 %v530
        %v563 = vunpack.c.l.b16 %v531
        %v564 = vunpack.c.l.b16 %v532
        %v565 = vunpack.c.l.b16 %v533
        %v566 = vunpack.c.l.b16 %v534
        %v567 = vunpack.c.l.b16 %v535
        %v568 = vunpack.c.l.b16 %v536
        %v569 = vunpack.c.l.b16 %v537
        %v570 = vunpack.c.l.b16 %v538
        %v571 = vunpack.c.l.b16 %v539
        %v572 = vunpack.c.l.b16 %v540
        %v573 = vunpack.c.l.b16 %v541
        %v574 = vunpack.c.l.b16 %v542
        %v575 = vunpack.c.l.b16 %v543
        %v576 = vunpack.c.l.b16 %v544
        %v577 = vunpack.c.l.b16 %v545
        %v578 = vpack.c.b16 %v563, %v562
        %v579 = vpack.c.b16 %v565, %v564
        %v580 = vpack.c.b16 %v567, %v566
        %v581 = vpack.c.b16 %v569, %v568
        %v582 = vpack.c.b16 %v571, %v570
        %v583 = vpack.c.b16 %v573, %v572
        %v584 = vpack.c.b16 %v575, %v574
        %v585 = vpack.c.b16 %v577, %v576
        %594 = vmatpush.bf16.msra.mxu0 %v585
        %595 = vmatpush.bf16.msra.mxu0 %v584
        %596 = vmatpush.bf16.msra.mxu0 %v583
        %597 = vmatpush.bf16.msra.mxu0 %v582
        %598 = vmatpush.bf16.msra.mxu0 %v581
        %599 = vmatpush.bf16.msra.mxu0 %v580
        %600 = vmatpush.bf16.msra.mxu0 %v579
        %601 = vmatpush.bf16.msra.mxu0 %v578
        %602 = vmatmul.bf16.gmra.mxu0 %v513
        %v603 = vpop.f32.mrf.mxu0
        %v604 = vadd.f32 0.0, %v603
        %v605 = vpop.f32.mrf.mxu0
        %v606 = vadd.f32 0.0, %v605
        %607 = vmatmul.bf16.gmra.mxu0 %v514
        %v608 = vpop.f32.mrf.mxu0
        %v609 = vadd.f32 0.0, %v608
        %v610 = vpop.f32.mrf.mxu0
        %v611 = vadd.f32 0.0, %v610
        %612 = vmatmul.bf16.gmra.mxu0 %v515
        %v613 = vpop.f32.mrf.mxu0
        %v614 = vadd.f32 0.0, %v613
        %v615 = vpop.f32.mrf.mxu0
        %v616 = vadd.f32 0.0, %v615
        %617 = vmatmul.bf16.gmra.mxu0 %v516
        %v618 = vpop.f32.mrf.mxu0
        %v619 = vadd.f32 0.0, %v618
        %v620 = vpop.f32.mrf.mxu0
        %v621 = vadd.f32 0.0, %v620
        %622 = vmatmul.bf16.gmra.mxu0 %v517
        %v623 = vpop.f32.mrf.mxu0
        %v624 = vadd.f32 0.0, %v623
        %v625 = vpop.f32.mrf.mxu0
        %v626 = vadd.f32 0.0, %v625
        %627 = vmatmul.bf16.gmra.mxu0 %v518
        %v628 = vpop.f32.mrf.mxu0
        %v629 = vadd.f32 0.0, %v628
        %v630 = vpop.f32.mrf.mxu0
        %v631 = vadd.f32 0.0, %v630
        %632 = vmatmul.bf16.gmra.mxu0 %v519
        %v633 = vpop.f32.mrf.mxu0
        %v634 = vadd.f32 0.0, %v633
        %v635 = vpop.f32.mrf.mxu0
        %v636 = vadd.f32 0.0, %v635
        %637 = vmatmul.bf16.gmra.mxu0 %v520
        %v638 = vpop.f32.mrf.mxu0
        %v639 = vadd.f32 0.0, %v638
        %v640 = vpop.f32.mrf.mxu0
        %v641 = vadd.f32 0.0, %v640
        %642 = vmatmul.bf16.gmra.mxu0 %v521
        %v643 = vpop.f32.mrf.mxu0
        %v644 = vadd.f32 0.0, %v643
        %v645 = vpop.f32.mrf.mxu0
        %v646 = vadd.f32 0.0, %v645
        %647 = vmatmul.bf16.gmra.mxu0 %v522
        %v648 = vpop.f32.mrf.mxu0
        %v649 = vadd.f32 0.0, %v648
        %v650 = vpop.f32.mrf.mxu0
        %v651 = vadd.f32 0.0, %v650
        %652 = vmatmul.bf16.gmra.mxu0 %v523
        %v653 = vpop.f32.mrf.mxu0
        %v654 = vadd.f32 0.0, %v653
        %v655 = vpop.f32.mrf.mxu0
        %v656 = vadd.f32 0.0, %v655
        %657 = vmatmul.bf16.gmra.mxu0 %v524
        %v658 = vpop.f32.mrf.mxu0
        %v659 = vadd.f32 0.0, %v658
        %v660 = vpop.f32.mrf.mxu0
        %v661 = vadd.f32 0.0, %v660
        %662 = vmatmul.bf16.gmra.mxu0 %v525
        %v663 = vpop.f32.mrf.mxu0
        %v664 = vadd.f32 0.0, %v663
        %v665 = vpop.f32.mrf.mxu0
        %v666 = vadd.f32 0.0, %v665
        %667 = vmatmul.bf16.gmra.mxu0 %v526
        %v668 = vpop.f32.mrf.mxu0
        %v669 = vadd.f32 0.0, %v668
        %v670 = vpop.f32.mrf.mxu0
        %v671 = vadd.f32 0.0, %v670
        %672 = vmatmul.bf16.gmra.mxu0 %v527
        %v673 = vpop.f32.mrf.mxu0
        %v674 = vadd.f32 0.0, %v673
        %v675 = vpop.f32.mrf.mxu0
        %v676 = vadd.f32 0.0, %v675
        %677 = vmatmul.bf16.gmra.mxu0 %v528
        %v678 = vpop.f32.mrf.mxu0
        %v679 = vadd.f32 0.0, %v678
        %v680 = vpop.f32.mrf.mxu0
        %v681 = vadd.f32 0.0, %v680
        %682 = vdwg.mxu0
        %v699 = vunpack.c.l.b16 %v336
        %v700 = vunpack.c.l.b16 %v337
        %v701 = vunpack.c.l.b16 %v338
        %v702 = vunpack.c.l.b16 %v339
        %v703 = vunpack.c.l.b16 %v340
        %v704 = vunpack.c.l.b16 %v341
        %v705 = vunpack.c.l.b16 %v342
        %v706 = vunpack.c.l.b16 %v343
        %v707 = vunpack.c.l.b16 %v344
        %v708 = vunpack.c.l.b16 %v345
        %v709 = vunpack.c.l.b16 %v346
        %v710 = vunpack.c.l.b16 %v347
        %v711 = vunpack.c.l.b16 %v348
        %v712 = vunpack.c.l.b16 %v349
        %v713 = vunpack.c.l.b16 %v350
        %v714 = vunpack.c.l.b16 %v351
        %v715 = vpack.c.b16 %v700, %v699
        %v716 = vpack.c.b16 %v702, %v701
        %v717 = vpack.c.b16 %v704, %v703
        %v718 = vpack.c.b16 %v706, %v705
        %v719 = vpack.c.b16 %v708, %v707
        %v720 = vpack.c.b16 %v710, %v709
        %v721 = vpack.c.b16 %v712, %v711
        %v722 = vpack.c.b16 %v714, %v713
        %731 = vmatpush.bf16.msra.mxu0 %v722
        %732 = vmatpush.bf16.msra.mxu0 %v721
        %733 = vmatpush.bf16.msra.mxu0 %v720
        %734 = vmatpush.bf16.msra.mxu0 %v719
        %735 = vmatpush.bf16.msra.mxu0 %v718
        %736 = vmatpush.bf16.msra.mxu0 %v717
        %737 = vmatpush.bf16.msra.mxu0 %v716
        %738 = vmatpush.bf16.msra.mxu0 %v715
        %739 = vmatmul.bf16.gmra.mxu0 %v320
        %v740 = vpop.f32.mrf.mxu0
        %v741 = vadd.f32 %v604, %v740
        %v742 = vpop.f32.mrf.mxu0
        %v743 = vadd.f32 %v606, %v742
        %744 = vmatmul.bf16.gmra.mxu0 %v321
        %v745 = vpop.f32.mrf.mxu0
        %v746 = vadd.f32 %v609, %v745
        %v747 = vpop.f32.mrf.mxu0
        %v748 = vadd.f32 %v611, %v747
        %749 = vmatmul.bf16.gmra.mxu0 %v322
        %v750 = vpop.f32.mrf.mxu0
        %v751 = vadd.f32 %v614, %v750
        %v752 = vpop.f32.mrf.mxu0
        %v753 = vadd.f32 %v616, %v752
        %754 = vmatmul.bf16.gmra.mxu0 %v323
        %v755 = vpop.f32.mrf.mxu0
        %v756 = vadd.f32 %v619, %v755
        %v757 = vpop.f32.mrf.mxu0
        %v758 = vadd.f32 %v621, %v757
        %759 = vmatmul.bf16.gmra.mxu0 %v324
        %v760 = vpop.f32.mrf.mxu0
        %v761 = vadd.f32 %v624, %v760
        %v762 = vpop.f32.mrf.mxu0
        %v763 = vadd.f32 %v626, %v762
        %764 = vmatmul.bf16.gmra.mxu0 %v325
        %v765 = vpop.f32.mrf.mxu0
        %v766 = vadd.f32 %v629, %v765
        %v767 = vpop.f32.mrf.mxu0
        %v768 = vadd.f32 %v631, %v767
        %769 = vmatmul.bf16.gmra.mxu0 %v326
        %v770 = vpop.f32.mrf.mxu0
        %v771 = vadd.f32 %v634, %v770
        %v772 = vpop.f32.mrf.mxu0
        %v773 = vadd.f32 %v636, %v772
        %774 = vmatmul.bf16.gmra.mxu0 %v327
        %v775 = vpop.f32.mrf.mxu0
        %v776 = vadd.f32 %v639, %v775
        %v777 = vpop.f32.mrf.mxu0
        %v778 = vadd.f32 %v641, %v777
        %779 = vmatmul.bf16.gmra.mxu0 %v328
        %v780 = vpop.f32.mrf.mxu0
        %v781 = vadd.f32 %v644, %v780
        %v782 = vpop.f32.mrf.mxu0
        %v783 = vadd.f32 %v646, %v782
        %784 = vmatmul.bf16.gmra.mxu0 %v329
        %v785 = vpop.f32.mrf.mxu0
        %v786 = vadd.f32 %v649, %v785
        %v787 = vpop.f32.mrf.mxu0
        %v788 = vadd.f32 %v651, %v787
        %789 = vmatmul.bf16.gmra.mxu0 %v330
        %v790 = vpop.f32.mrf.mxu0
        %v791 = vadd.f32 %v654, %v790
        %v792 = vpop.f32.mrf.mxu0
        %v793 = vadd.f32 %v656, %v792
        %794 = vmatmul.bf16.gmra.mxu0 %v331
        %v795 = vpop.f32.mrf.mxu0
        %v796 = vadd.f32 %v659, %v795
        %v797 = vpop.f32.mrf.mxu0
        %v798 = vadd.f32 %v661, %v797
        %799 = vmatmul.bf16.gmra.mxu0 %v332
        %v800 = vpop.f32.mrf.mxu0
        %v801 = vadd.f32 %v664, %v800
        %v802 = vpop.f32.mrf.mxu0
        %v803 = vadd.f32 %v666, %v802
        %804 = vmatmul.bf16.gmra.mxu0 %v333
        %v805 = vpop.f32.mrf.mxu0
        %v806 = vadd.f32 %v669, %v805
        %v807 = vpop.f32.mrf.mxu0
        %v808 = vadd.f32 %v671, %v807
        %809 = vmatmul.bf16.gmra.mxu0 %v334
        %v810 = vpop.f32.mrf.mxu0
        %v811 = vadd.f32 %v674, %v810
        %v812 = vpop.f32.mrf.mxu0
        %v813 = vadd.f32 %v676, %v812
        %814 = vmatmul.bf16.gmra.mxu0 %v335
        %v815 = vpop.f32.mrf.mxu0
        %v816 = vadd.f32 %v679, %v815
        %v817 = vpop.f32.mrf.mxu0
        %v818 = vadd.f32 %v681, %v817
        %819 = vdwg.mxu0
        %vm820 = vcmask 1045504
        %v821 = vrot.slane %v266, 2
        %v822 = vrot.slane %v267, 2
        %v823 = vsel %vm820, %v821, %v822
        %v824 = vrot.slane %v268, 2
        %v825 = vsel %vm820, %v822, %v824
        %v826 = vrot.slane %v269, 2
        %v827 = vrot.slane %v270, 2
        %v828 = vsel %vm820, %v826, %v827
        %v829 = vrot.slane %v271, 2
        %v830 = vsel %vm820, %v827, %v829
        %v831 = vrot.slane %v272, 2
        %v832 = vrot.slane %v273, 2
        %v833 = vsel %vm820, %v831, %v832
        %v834 = vrot.slane %v274, 2
        %v835 = vsel %vm820, %v832, %v834
        %v836 = vrot.slane %v275, 2
        %v837 = vrot.slane %v276, 2
        %v838 = vsel %vm820, %v836, %v837
        %v839 = vrot.slane %v277, 2
        %v840 = vsel %vm820, %v837, %v839
        %v841 = vrot.slane %v278, 2
        %v842 = vrot.slane %v279, 2
        %v843 = vsel %vm820, %v841, %v842
        %v844 = vrot.slane %v280, 2
        %v845 = vsel %vm820, %v842, %v844
        %v846 = vrot.slane %v281, 2
        %v847 = vrot.slane %v282, 2
        %v848 = vsel %vm820, %v846, %v847
        %v849 = vrot.slane %v283, 2
        %v850 = vsel %vm820, %v847, %v849
        %v851 = vrot.slane %v284, 2
        %v852 = vrot.slane %v285, 2
        %v853 = vsel %vm820, %v851, %v852
        %v854 = vrot.slane %v286, 2
        %v855 = vsel %vm820, %v852, %v854
        %v856 = vrot.slane %v287, 2
        %v857 = vrot.slane %v288, 2
        %v858 = vsel %vm820, %v856, %v857
        %v859 = vrot.slane %v289, 2
        %v860 = vsel %vm820, %v857, %v859
        %v861 = vrot.slane %v290, 2
        %v862 = vrot.slane %v291, 2
        %v863 = vsel %vm820, %v861, %v862
        %v864 = vrot.slane %v292, 2
        %v865 = vsel %vm820, %v862, %v864
        %v866 = vrot.slane %v293, 2
        %v867 = vrot.slane %v294, 2
        %v868 = vsel %vm820, %v866, %v867
        %v869 = vrot.slane %v295, 2
        %v870 = vsel %vm820, %v867, %v869
        %v871 = vrot.slane %v296, 2
        %v872 = vrot.slane %v297, 2
        %v873 = vsel %vm820, %v871, %v872
        %v874 = vrot.slane %v298, 2
        %v875 = vsel %vm820, %v872, %v874
        %v876 = vrot.slane %v299, 2
        %v877 = vrot.slane %v300, 2
        %v878 = vsel %vm820, %v876, %v877
        %v879 = vrot.slane %v301, 2
        %v880 = vsel %vm820, %v877, %v879
        %v881 = vrot.slane %v302, 2
        %v882 = vrot.slane %v303, 2
        %v883 = vsel %vm820, %v881, %v882
        %v884 = vrot.slane %v304, 2
        %v885 = vsel %vm820, %v882, %v884
        %v886 = vrot.slane %v305, 2
        %v887 = vrot.slane %v306, 2
        %v888 = vsel %vm820, %v886, %v887
        %v889 = vrot.slane %v307, 2
        %v890 = vsel %vm820, %v887, %v889
        %v891 = vrot.slane %v308, 2
        %v892 = vrot.slane %v309, 2
        %v893 = vsel %vm820, %v891, %v892
        %v894 = vrot.slane %v310, 2
        %v895 = vsel %vm820, %v892, %v894
        %v896 = vrot.slane %v311, 2
        %v897 = vrot.slane %v312, 2
        %v898 = vsel %vm820, %v896, %v897
        %v899 = vrot.slane %v313, 2
        %v900 = vsel %vm820, %v897, %v899
        %v933 = vpack.c.bf16 %v825, %v823
        %v934 = vpack.c.bf16 %v830, %v828
        %v935 = vpack.c.bf16 %v835, %v833
        %v936 = vpack.c.bf16 %v840, %v838
        %v937 = vpack.c.bf16 %v845, %v843
        %v938 = vpack.c.bf16 %v850, %v848
        %v939 = vpack.c.bf16 %v855, %v853
        %v940 = vpack.c.bf16 %v860, %v858
        %v941 = vpack.c.bf16 %v865, %v863
        %v942 = vpack.c.bf16 %v870, %v868
        %v943 = vpack.c.bf16 %v875, %v873
        %v944 = vpack.c.bf16 %v880, %v878
        %v945 = vpack.c.bf16 %v885, %v883
        %v946 = vpack.c.bf16 %v890, %v888
        %v947 = vpack.c.bf16 %v895, %v893
        %v948 = vpack.c.bf16 %v900, %v898
        %s949 = scalar_lea.vmem %s1, 128
        %v950 = vld [vmem:[%s949] sm:$0xf]
        %v951 = vld [vmem:[%s949 + $0x4] sm:$0xf]
        %v952 = vld [vmem:[%s949 + $0x8] sm:$0xf]
        %v953 = vld [vmem:[%s949 + $0xc] sm:$0xf]
        %v954 = vld [vmem:[%s949 + $0x10] sm:$0xf]
        %v955 = vld [vmem:[%s949 + $0x14] sm:$0xf]
        %v956 = vld [vmem:[%s949 + $0x18] sm:$0xf]
        %v957 = vld [vmem:[%s949 + $0x1c] sm:$0xf]
        %v958 = vld [vmem:[%s949 + $0x20] sm:$0xf]
        %v959 = vld [vmem:[%s949 + $0x24] sm:$0xf]
        %v960 = vld [vmem:[%s949 + $0x28] sm:$0xf]
        %v961 = vld [vmem:[%s949 + $0x2c] sm:$0xf]
        %v962 = vld [vmem:[%s949 + $0x30] sm:$0xf]
        %v963 = vld [vmem:[%s949 + $0x34] sm:$0xf]
        %v964 = vld [vmem:[%s949 + $0x38] sm:$0xf]
        %v965 = vld [vmem:[%s949 + $0x3c] sm:$0xf]
        %v982 = vunpack.c.l.b16 %v950
        %v983 = vunpack.c.l.b16 %v951
        %v984 = vunpack.c.l.b16 %v952
        %v985 = vunpack.c.l.b16 %v953
        %v986 = vunpack.c.l.b16 %v954
        %v987 = vunpack.c.l.b16 %v955
        %v988 = vunpack.c.l.b16 %v956
        %v989 = vunpack.c.l.b16 %v957
        %v990 = vunpack.c.l.b16 %v958
        %v991 = vunpack.c.l.b16 %v959
        %v992 = vunpack.c.l.b16 %v960
        %v993 = vunpack.c.l.b16 %v961
        %v994 = vunpack.c.l.b16 %v962
        %v995 = vunpack.c.l.b16 %v963
        %v996 = vunpack.c.l.b16 %v964
        %v997 = vunpack.c.l.b16 %v965
        %v998 = vpack.c.b16 %v983, %v982
        %v999 = vpack.c.b16 %v985, %v984
        %v1000 = vpack.c.b16 %v987, %v986
        %v1001 = vpack.c.b16 %v989, %v988
        %v1002 = vpack.c.b16 %v991, %v990
        %v1003 = vpack.c.b16 %v993, %v992
        %v1004 = vpack.c.b16 %v995, %v994
        %v1005 = vpack.c.b16 %v997, %v996
        %1014 = vmatpush.bf16.msra.mxu0 %v1005
        %1015 = vmatpush.bf16.msra.mxu0 %v1004
        %1016 = vmatpush.bf16.msra.mxu0 %v1003
        %1017 = vmatpush.bf16.msra.mxu0 %v1002
        %1018 = vmatpush.bf16.msra.mxu0 %v1001
        %1019 = vmatpush.bf16.msra.mxu0 %v1000
        %1020 = vmatpush.bf16.msra.mxu0 %v999
        %1021 = vmatpush.bf16.msra.mxu0 %v998
        %1022 = vmatmul.bf16.gmra.mxu0 %v933
        %v1023 = vpop.f32.mrf.mxu0
        %v1024 = vadd.f32 0.0, %v1023
        %v1025 = vpop.f32.mrf.mxu0
        %v1026 = vadd.f32 0.0, %v1025
        %1027 = vmatmul.bf16.gmra.mxu0 %v934
        %v1028 = vpop.f32.mrf.mxu0
        %v1029 = vadd.f32 0.0, %v1028
        %v1030 = vpop.f32.mrf.mxu0
        %v1031 = vadd.f32 0.0, %v1030
        %1032 = vmatmul.bf16.gmra.mxu0 %v935
        %v1033 = vpop.f32.mrf.mxu0
        %v1034 = vadd.f32 0.0, %v1033
        %v1035 = vpop.f32.mrf.mxu0
        %v1036 = vadd.f32 0.0, %v1035
        %1037 = vmatmul.bf16.gmra.mxu0 %v936
        %v1038 = vpop.f32.mrf.mxu0
        %v1039 = vadd.f32 0.0, %v1038
        %v1040 = vpop.f32.mrf.mxu0
        %v1041 = vadd.f32 0.0, %v1040
        %1042 = vmatmul.bf16.gmra.mxu0 %v937
        %v1043 = vpop.f32.mrf.mxu0
        %v1044 = vadd.f32 0.0, %v1043
        %v1045 = vpop.f32.mrf.mxu0
        %v1046 = vadd.f32 0.0, %v1045
        %1047 = vmatmul.bf16.gmra.mxu0 %v938
        %v1048 = vpop.f32.mrf.mxu0
        %v1049 = vadd.f32 0.0, %v1048
        %v1050 = vpop.f32.mrf.mxu0
        %v1051 = vadd.f32 0.0, %v1050
        %1052 = vmatmul.bf16.gmra.mxu0 %v939
        %v1053 = vpop.f32.mrf.mxu0
        %v1054 = vadd.f32 0.0, %v1053
        %v1055 = vpop.f32.mrf.mxu0
        %v1056 = vadd.f32 0.0, %v1055
        %1057 = vmatmul.bf16.gmra.mxu0 %v940
        %v1058 = vpop.f32.mrf.mxu0
        %v1059 = vadd.f32 0.0, %v1058
        %v1060 = vpop.f32.mrf.mxu0
        %v1061 = vadd.f32 0.0, %v1060
        %1062 = vmatmul.bf16.gmra.mxu0 %v941
        %v1063 = vpop.f32.mrf.mxu0
        %v1064 = vadd.f32 0.0, %v1063
        %v1065 = vpop.f32.mrf.mxu0
        %v1066 = vadd.f32 0.0, %v1065
        %1067 = vmatmul.bf16.gmra.mxu0 %v942
        %v1068 = vpop.f32.mrf.mxu0
        %v1069 = vadd.f32 0.0, %v1068
        %v1070 = vpop.f32.mrf.mxu0
        %v1071 = vadd.f32 0.0, %v1070
        %1072 = vmatmul.bf16.gmra.mxu0 %v943
        %v1073 = vpop.f32.mrf.mxu0
        %v1074 = vadd.f32 0.0, %v1073
        %v1075 = vpop.f32.mrf.mxu0
        %v1076 = vadd.f32 0.0, %v1075
        %1077 = vmatmul.bf16.gmra.mxu0 %v944
        %v1078 = vpop.f32.mrf.mxu0
        %v1079 = vadd.f32 0.0, %v1078
        %v1080 = vpop.f32.mrf.mxu0
        %v1081 = vadd.f32 0.0, %v1080
        %1082 = vmatmul.bf16.gmra.mxu0 %v945
        %v1083 = vpop.f32.mrf.mxu0
        %v1084 = vadd.f32 0.0, %v1083
        %v1085 = vpop.f32.mrf.mxu0
        %v1086 = vadd.f32 0.0, %v1085
        %1087 = vmatmul.bf16.gmra.mxu0 %v946
        %v1088 = vpop.f32.mrf.mxu0
        %v1089 = vadd.f32 0.0, %v1088
        %v1090 = vpop.f32.mrf.mxu0
        %v1091 = vadd.f32 0.0, %v1090
        %1092 = vmatmul.bf16.gmra.mxu0 %v947
        %v1093 = vpop.f32.mrf.mxu0
        %v1094 = vadd.f32 0.0, %v1093
        %v1095 = vpop.f32.mrf.mxu0
        %v1096 = vadd.f32 0.0, %v1095
        %1097 = vmatmul.bf16.gmra.mxu0 %v948
        %v1098 = vpop.f32.mrf.mxu0
        %v1099 = vadd.f32 0.0, %v1098
        %v1100 = vpop.f32.mrf.mxu0
        %v1101 = vadd.f32 0.0, %v1100
        %1102 = vdwg.mxu0
        %v1103 = vadd.f32 %v741, %v1024
        %v1104 = vadd.f32 %v743, %v1026
        %v1105 = vadd.f32 %v746, %v1029
        %v1106 = vadd.f32 %v748, %v1031
        %v1107 = vadd.f32 %v751, %v1034
        %v1108 = vadd.f32 %v753, %v1036
        %v1109 = vadd.f32 %v756, %v1039
        %v1110 = vadd.f32 %v758, %v1041
        %v1111 = vadd.f32 %v761, %v1044
        %v1112 = vadd.f32 %v763, %v1046
        %v1113 = vadd.f32 %v766, %v1049
        %v1114 = vadd.f32 %v768, %v1051
        %v1115 = vadd.f32 %v771, %v1054
        %v1116 = vadd.f32 %v773, %v1056
        %v1117 = vadd.f32 %v776, %v1059
        %v1118 = vadd.f32 %v778, %v1061
        %v1119 = vadd.f32 %v781, %v1064
        %v1120 = vadd.f32 %v783, %v1066
        %v1121 = vadd.f32 %v786, %v1069
        %v1122 = vadd.f32 %v788, %v1071
        %v1123 = vadd.f32 %v791, %v1074
        %v1124 = vadd.f32 %v793, %v1076
        %v1125 = vadd.f32 %v796, %v1079
        %v1126 = vadd.f32 %v798, %v1081
        %v1127 = vadd.f32 %v801, %v1084
        %v1128 = vadd.f32 %v803, %v1086
        %v1129 = vadd.f32 %v806, %v1089
        %v1130 = vadd.f32 %v808, %v1091
        %v1131 = vadd.f32 %v811, %v1094
        %v1132 = vadd.f32 %v813, %v1096
        %v1133 = vadd.f32 %v816, %v1099
        %v1134 = vadd.f32 %v818, %v1101
        %v1135 = vpack.c.bf16 %v315, %v314
        %s1136 = scalar_lea.vmem %s1, 192
        %v1137 = vld [vmem:[%s1136] sm:$0xf]
        %v1138 = vld [vmem:[%s1136 + $0x4] sm:$0xf]
        %v1139 = vld [vmem:[%s1136 + $0x8] sm:$0xf]
        %v1140 = vld [vmem:[%s1136 + $0xc] sm:$0xf]
        %v1141 = vld [vmem:[%s1136 + $0x10] sm:$0xf]
        %v1142 = vld [vmem:[%s1136 + $0x14] sm:$0xf]
        %v1143 = vld [vmem:[%s1136 + $0x18] sm:$0xf]
        %v1144 = vld [vmem:[%s1136 + $0x1c] sm:$0xf]
        %v1145 = vld [vmem:[%s1136 + $0x20] sm:$0xf]
        %v1146 = vld [vmem:[%s1136 + $0x24] sm:$0xf]
        %v1147 = vld [vmem:[%s1136 + $0x28] sm:$0xf]
        %v1148 = vld [vmem:[%s1136 + $0x2c] sm:$0xf]
        %v1149 = vld [vmem:[%s1136 + $0x30] sm:$0xf]
        %v1150 = vld [vmem:[%s1136 + $0x34] sm:$0xf]
        %v1151 = vld [vmem:[%s1136 + $0x38] sm:$0xf]
        %v1152 = vld [vmem:[%s1136 + $0x3c] sm:$0xf]
        %v1169 = vunpack.c.l.b16 %v1137
        %v1170 = vunpack.c.l.b16 %v1138
        %v1171 = vunpack.c.l.b16 %v1139
        %v1172 = vunpack.c.l.b16 %v1140
        %v1173 = vunpack.c.l.b16 %v1141
        %v1174 = vunpack.c.l.b16 %v1142
        %v1175 = vunpack.c.l.b16 %v1143
        %v1176 = vunpack.c.l.b16 %v1144
        %v1177 = vunpack.c.l.b16 %v1145
        %v1178 = vunpack.c.l.b16 %v1146
        %v1179 = vunpack.c.l.b16 %v1147
        %v1180 = vunpack.c.l.b16 %v1148
        %v1181 = vunpack.c.l.b16 %v1149
        %v1182 = vunpack.c.l.b16 %v1150
        %v1183 = vunpack.c.l.b16 %v1151
        %v1184 = vunpack.c.l.b16 %v1152
        %v1185 = vpack.c.b16 %v1170, %v1169
        %v1186 = vpack.c.b16 %v1172, %v1171
        %v1187 = vpack.c.b16 %v1174, %v1173
        %v1188 = vpack.c.b16 %v1176, %v1175
        %v1189 = vpack.c.b16 %v1178, %v1177
        %v1190 = vpack.c.b16 %v1180, %v1179
        %v1191 = vpack.c.b16 %v1182, %v1181
        %v1192 = vpack.c.b16 %v1184, %v1183
        %1201 = vmatpush.bf16.msra.mxu0 %v1192
        %1202 = vmatpush.bf16.msra.mxu0 %v1191
        %1203 = vmatpush.bf16.msra.mxu0 %v1190
        %1204 = vmatpush.bf16.msra.mxu0 %v1189
        %1205 = vmatpush.bf16.msra.mxu0 %v1188
        %1206 = vmatpush.bf16.msra.mxu0 %v1187
        %1207 = vmatpush.bf16.msra.mxu0 %v1186
        %1208 = vmatpush.bf16.msra.mxu0 %v1185
        %1209 = vmatmul.bf16.gmra.mxu0 %v321
        %v1210 = vpop.f32.mrf.mxu0
        %v1211 = vadd.f32 0.0, %v1210
        %v1212 = vpop.f32.mrf.mxu0
        %v1213 = vadd.f32 0.0, %v1212
        %1214 = vmatmul.bf16.gmra.mxu0 %v322
        %v1215 = vpop.f32.mrf.mxu0
        %v1216 = vadd.f32 0.0, %v1215
        %v1217 = vpop.f32.mrf.mxu0
        %v1218 = vadd.f32 0.0, %v1217
        %1219 = vmatmul.bf16.gmra.mxu0 %v323
        %v1220 = vpop.f32.mrf.mxu0
        %v1221 = vadd.f32 0.0, %v1220
        %v1222 = vpop.f32.mrf.mxu0
        %v1223 = vadd.f32 0.0, %v1222
        %1224 = vmatmul.bf16.gmra.mxu0 %v324
        %v1225 = vpop.f32.mrf.mxu0
        %v1226 = vadd.f32 0.0, %v1225
        %v1227 = vpop.f32.mrf.mxu0
        %v1228 = vadd.f32 0.0, %v1227
        %1229 = vmatmul.bf16.gmra.mxu0 %v325
        %v1230 = vpop.f32.mrf.mxu0
        %v1231 = vadd.f32 0.0, %v1230
        %v1232 = vpop.f32.mrf.mxu0
        %v1233 = vadd.f32 0.0, %v1232
        %1234 = vmatmul.bf16.gmra.mxu0 %v326
        %v1235 = vpop.f32.mrf.mxu0
        %v1236 = vadd.f32 0.0, %v1235
        %v1237 = vpop.f32.mrf.mxu0
        %v1238 = vadd.f32 0.0, %v1237
        %1239 = vmatmul.bf16.gmra.mxu0 %v327
        %v1240 = vpop.f32.mrf.mxu0
        %v1241 = vadd.f32 0.0, %v1240
        %v1242 = vpop.f32.mrf.mxu0
        %v1243 = vadd.f32 0.0, %v1242
        %1244 = vmatmul.bf16.gmra.mxu0 %v328
        %v1245 = vpop.f32.mrf.mxu0
        %v1246 = vadd.f32 0.0, %v1245
        %v1247 = vpop.f32.mrf.mxu0
        %v1248 = vadd.f32 0.0, %v1247
        %1249 = vmatmul.bf16.gmra.mxu0 %v329
        %v1250 = vpop.f32.mrf.mxu0
        %v1251 = vadd.f32 0.0, %v1250
        %v1252 = vpop.f32.mrf.mxu0
        %v1253 = vadd.f32 0.0, %v1252
        %1254 = vmatmul.bf16.gmra.mxu0 %v330
        %v1255 = vpop.f32.mrf.mxu0
        %v1256 = vadd.f32 0.0, %v1255
        %v1257 = vpop.f32.mrf.mxu0
        %v1258 = vadd.f32 0.0, %v1257
        %1259 = vmatmul.bf16.gmra.mxu0 %v331
        %v1260 = vpop.f32.mrf.mxu0
        %v1261 = vadd.f32 0.0, %v1260
        %v1262 = vpop.f32.mrf.mxu0
        %v1263 = vadd.f32 0.0, %v1262
        %1264 = vmatmul.bf16.gmra.mxu0 %v332
        %v1265 = vpop.f32.mrf.mxu0
        %v1266 = vadd.f32 0.0, %v1265
        %v1267 = vpop.f32.mrf.mxu0
        %v1268 = vadd.f32 0.0, %v1267
        %1269 = vmatmul.bf16.gmra.mxu0 %v333
        %v1270 = vpop.f32.mrf.mxu0
        %v1271 = vadd.f32 0.0, %v1270
        %v1272 = vpop.f32.mrf.mxu0
        %v1273 = vadd.f32 0.0, %v1272
        %1274 = vmatmul.bf16.gmra.mxu0 %v334
        %v1275 = vpop.f32.mrf.mxu0
        %v1276 = vadd.f32 0.0, %v1275
        %v1277 = vpop.f32.mrf.mxu0
        %v1278 = vadd.f32 0.0, %v1277
        %1279 = vmatmul.bf16.gmra.mxu0 %v335
        %v1280 = vpop.f32.mrf.mxu0
        %v1281 = vadd.f32 0.0, %v1280
        %v1282 = vpop.f32.mrf.mxu0
        %v1283 = vadd.f32 0.0, %v1282
        %1284 = vmatmul.bf16.gmra.mxu0 %v1135
        %v1285 = vpop.f32.mrf.mxu0
        %v1286 = vadd.f32 0.0, %v1285
        %v1287 = vpop.f32.mrf.mxu0
        %v1288 = vadd.f32 0.0, %v1287
        %1289 = vdwg.mxu0
        %v1290 = vadd.f32 %v1103, %v1211
        %v1291 = vadd.f32 %v1104, %v1213
        %v1292 = vadd.f32 %v1105, %v1216
        %v1293 = vadd.f32 %v1106, %v1218
        %v1294 = vadd.f32 %v1107, %v1221
        %v1295 = vadd.f32 %v1108, %v1223
        %v1296 = vadd.f32 %v1109, %v1226
        %v1297 = vadd.f32 %v1110, %v1228
        %v1298 = vadd.f32 %v1111, %v1231
        %v1299 = vadd.f32 %v1112, %v1233
        %v1300 = vadd.f32 %v1113, %v1236
        %v1301 = vadd.f32 %v1114, %v1238
        %v1302 = vadd.f32 %v1115, %v1241
        %v1303 = vadd.f32 %v1116, %v1243
        %v1304 = vadd.f32 %v1117, %v1246
        %v1305 = vadd.f32 %v1118, %v1248
        %v1306 = vadd.f32 %v1119, %v1251
        %v1307 = vadd.f32 %v1120, %v1253
        %v1308 = vadd.f32 %v1121, %v1256
        %v1309 = vadd.f32 %v1122, %v1258
        %v1310 = vadd.f32 %v1123, %v1261
        %v1311 = vadd.f32 %v1124, %v1263
        %v1312 = vadd.f32 %v1125, %v1266
        %v1313 = vadd.f32 %v1126, %v1268
        %v1314 = vadd.f32 %v1127, %v1271
        %v1315 = vadd.f32 %v1128, %v1273
        %v1316 = vadd.f32 %v1129, %v1276
        %v1317 = vadd.f32 %v1130, %v1278
        %v1318 = vadd.f32 %v1131, %v1281
        %v1319 = vadd.f32 %v1132, %v1283
        %v1320 = vadd.f32 %v1133, %v1286
        %v1321 = vadd.f32 %v1134, %v1288
        %v1325 = vrot.slane %v314, 1
        %v1326 = vrot.slane %v315, 1
        %v1327 = vsel %vm400, %v1325, %v1326
        %v1328 = vrot.slane %v316, 1
        %v1329 = vsel %vm400, %v1326, %v1328
        %v1332 = vpack.c.bf16 %v1329, %v1327
        %s1333 = scalar_lea.vmem %s1, 256
        %v1334 = vld [vmem:[%s1333] sm:$0xf]
        %v1335 = vld [vmem:[%s1333 + $0x4] sm:$0xf]
        %v1336 = vld [vmem:[%s1333 + $0x8] sm:$0xf]
        %v1337 = vld [vmem:[%s1333 + $0xc] sm:$0xf]
        %v1338 = vld [vmem:[%s1333 + $0x10] sm:$0xf]
        %v1339 = vld [vmem:[%s1333 + $0x14] sm:$0xf]
        %v1340 = vld [vmem:[%s1333 + $0x18] sm:$0xf]
        %v1341 = vld [vmem:[%s1333 + $0x1c] sm:$0xf]
        %v1342 = vld [vmem:[%s1333 + $0x20] sm:$0xf]
        %v1343 = vld [vmem:[%s1333 + $0x24] sm:$0xf]
        %v1344 = vld [vmem:[%s1333 + $0x28] sm:$0xf]
        %v1345 = vld [vmem:[%s1333 + $0x2c] sm:$0xf]
        %v1346 = vld [vmem:[%s1333 + $0x30] sm:$0xf]
        %v1347 = vld [vmem:[%s1333 + $0x34] sm:$0xf]
        %v1348 = vld [vmem:[%s1333 + $0x38] sm:$0xf]
        %v1349 = vld [vmem:[%s1333 + $0x3c] sm:$0xf]
        %v1366 = vunpack.c.l.b16 %v1334
        %v1367 = vunpack.c.l.b16 %v1335
        %v1368 = vunpack.c.l.b16 %v1336
        %v1369 = vunpack.c.l.b16 %v1337
        %v1370 = vunpack.c.l.b16 %v1338
        %v1371 = vunpack.c.l.b16 %v1339
        %v1372 = vunpack.c.l.b16 %v1340
        %v1373 = vunpack.c.l.b16 %v1341
        %v1374 = vunpack.c.l.b16 %v1342
        %v1375 = vunpack.c.l.b16 %v1343
        %v1376 = vunpack.c.l.b16 %v1344
        %v1377 = vunpack.c.l.b16 %v1345
        %v1378 = vunpack.c.l.b16 %v1346
        %v1379 = vunpack.c.l.b16 %v1347
        %v1380 = vunpack.c.l.b16 %v1348
        %v1381 = vunpack.c.l.b16 %v1349
        %v1382 = vpack.c.b16 %v1367, %v1366
        %v1383 = vpack.c.b16 %v1369, %v1368
        %v1384 = vpack.c.b16 %v1371, %v1370
        %v1385 = vpack.c.b16 %v1373, %v1372
        %v1386 = vpack.c.b16 %v1375, %v1374
        %v1387 = vpack.c.b16 %v1377, %v1376
        %v1388 = vpack.c.b16 %v1379, %v1378
        %v1389 = vpack.c.b16 %v1381, %v1380
        %1398 = vmatpush.bf16.msra.mxu0 %v1389
        %1399 = vmatpush.bf16.msra.mxu0 %v1388
        %1400 = vmatpush.bf16.msra.mxu0 %v1387
        %1401 = vmatpush.bf16.msra.mxu0 %v1386
        %1402 = vmatpush.bf16.msra.mxu0 %v1385
        %1403 = vmatpush.bf16.msra.mxu0 %v1384
        %1404 = vmatpush.bf16.msra.mxu0 %v1383
        %1405 = vmatpush.bf16.msra.mxu0 %v1382
        %1406 = vmatmul.bf16.gmra.mxu0 %v514
        %v1407 = vpop.f32.mrf.mxu0
        %v1408 = vadd.f32 0.0, %v1407
        %v1409 = vpop.f32.mrf.mxu0
        %v1410 = vadd.f32 0.0, %v1409
        %1411 = vmatmul.bf16.gmra.mxu0 %v515
        %v1412 = vpop.f32.mrf.mxu0
        %v1413 = vadd.f32 0.0, %v1412
        %v1414 = vpop.f32.mrf.mxu0
        %v1415 = vadd.f32 0.0, %v1414
        %1416 = vmatmul.bf16.gmra.mxu0 %v516
        %v1417 = vpop.f32.mrf.mxu0
        %v1418 = vadd.f32 0.0, %v1417
        %v1419 = vpop.f32.mrf.mxu0
        %v1420 = vadd.f32 0.0, %v1419
        %1421 = vmatmul.bf16.gmra.mxu0 %v517
        %v1422 = vpop.f32.mrf.mxu0
        %v1423 = vadd.f32 0.0, %v1422
        %v1424 = vpop.f32.mrf.mxu0
        %v1425 = vadd.f32 0.0, %v1424
        %1426 = vmatmul.bf16.gmra.mxu0 %v518
        %v1427 = vpop.f32.mrf.mxu0
        %v1428 = vadd.f32 0.0, %v1427
        %v1429 = vpop.f32.mrf.mxu0
        %v1430 = vadd.f32 0.0, %v1429
        %1431 = vmatmul.bf16.gmra.mxu0 %v519
        %v1432 = vpop.f32.mrf.mxu0
        %v1433 = vadd.f32 0.0, %v1432
        %v1434 = vpop.f32.mrf.mxu0
        %v1435 = vadd.f32 0.0, %v1434
        %1436 = vmatmul.bf16.gmra.mxu0 %v520
        %v1437 = vpop.f32.mrf.mxu0
        %v1438 = vadd.f32 0.0, %v1437
        %v1439 = vpop.f32.mrf.mxu0
        %v1440 = vadd.f32 0.0, %v1439
        %1441 = vmatmul.bf16.gmra.mxu0 %v521
        %v1442 = vpop.f32.mrf.mxu0
        %v1443 = vadd.f32 0.0, %v1442
        %v1444 = vpop.f32.mrf.mxu0
        %v1445 = vadd.f32 0.0, %v1444
        %1446 = vmatmul.bf16.gmra.mxu0 %v522
        %v1447 = vpop.f32.mrf.mxu0
        %v1448 = vadd.f32 0.0, %v1447
        %v1449 = vpop.f32.mrf.mxu0
        %v1450 = vadd.f32 0.0, %v1449
        %1451 = vmatmul.bf16.gmra.mxu0 %v523
        %v1452 = vpop.f32.mrf.mxu0
        %v1453 = vadd.f32 0.0, %v1452
        %v1454 = vpop.f32.mrf.mxu0
        %v1455 = vadd.f32 0.0, %v1454
        %1456 = vmatmul.bf16.gmra.mxu0 %v524
        %v1457 = vpop.f32.mrf.mxu0
        %v1458 = vadd.f32 0.0, %v1457
        %v1459 = vpop.f32.mrf.mxu0
        %v1460 = vadd.f32 0.0, %v1459
        %1461 = vmatmul.bf16.gmra.mxu0 %v525
        %v1462 = vpop.f32.mrf.mxu0
        %v1463 = vadd.f32 0.0, %v1462
        %v1464 = vpop.f32.mrf.mxu0
        %v1465 = vadd.f32 0.0, %v1464
        %1466 = vmatmul.bf16.gmra.mxu0 %v526
        %v1467 = vpop.f32.mrf.mxu0
        %v1468 = vadd.f32 0.0, %v1467
        %v1469 = vpop.f32.mrf.mxu0
        %v1470 = vadd.f32 0.0, %v1469
        %1471 = vmatmul.bf16.gmra.mxu0 %v527
        %v1472 = vpop.f32.mrf.mxu0
        %v1473 = vadd.f32 0.0, %v1472
        %v1474 = vpop.f32.mrf.mxu0
        %v1475 = vadd.f32 0.0, %v1474
        %1476 = vmatmul.bf16.gmra.mxu0 %v528
        %v1477 = vpop.f32.mrf.mxu0
        %v1478 = vadd.f32 0.0, %v1477
        %v1479 = vpop.f32.mrf.mxu0
        %v1480 = vadd.f32 0.0, %v1479
        %1481 = vmatmul.bf16.gmra.mxu0 %v1332
        %v1482 = vpop.f32.mrf.mxu0
        %v1483 = vadd.f32 0.0, %v1482
        %v1484 = vpop.f32.mrf.mxu0
        %v1485 = vadd.f32 0.0, %v1484
        %1486 = vdwg.mxu0
        %v1487 = vadd.f32 %v1290, %v1408
        %v1488 = vadd.f32 %v1291, %v1410
        %v1489 = vadd.f32 %v1292, %v1413
        %v1490 = vadd.f32 %v1293, %v1415
        %v1491 = vadd.f32 %v1294, %v1418
        %v1492 = vadd.f32 %v1295, %v1420
        %v1493 = vadd.f32 %v1296, %v1423
        %v1494 = vadd.f32 %v1297, %v1425
        %v1495 = vadd.f32 %v1298, %v1428
        %v1496 = vadd.f32 %v1299, %v1430
        %v1497 = vadd.f32 %v1300, %v1433
        %v1498 = vadd.f32 %v1301, %v1435
        %v1499 = vadd.f32 %v1302, %v1438
        %v1500 = vadd.f32 %v1303, %v1440
        %v1501 = vadd.f32 %v1304, %v1443
        %v1502 = vadd.f32 %v1305, %v1445
        %v1503 = vadd.f32 %v1306, %v1448
        %v1504 = vadd.f32 %v1307, %v1450
        %v1505 = vadd.f32 %v1308, %v1453
        %v1506 = vadd.f32 %v1309, %v1455
        %v1507 = vadd.f32 %v1310, %v1458
        %v1508 = vadd.f32 %v1311, %v1460
        %v1509 = vadd.f32 %v1312, %v1463
        %v1510 = vadd.f32 %v1313, %v1465
        %v1511 = vadd.f32 %v1314, %v1468
        %v1512 = vadd.f32 %v1315, %v1470
        %v1513 = vadd.f32 %v1316, %v1473
        %v1514 = vadd.f32 %v1317, %v1475
        %v1515 = vadd.f32 %v1318, %v1478
        %v1516 = vadd.f32 %v1319, %v1480
        %v1517 = vadd.f32 %v1320, %v1483
        %v1518 = vadd.f32 %v1321, %v1485
        %v1519 = vrot.slane %v314, 2
        %v1520 = vrot.slane %v315, 2
        %v1521 = vsel %vm820, %v1519, %v1520
        %v1522 = vrot.slane %v316, 2
        %v1523 = vsel %vm820, %v1520, %v1522
        %v1526 = vpack.c.bf16 %v1523, %v1521
        %s1527 = scalar_lea.vmem %s1, 320
        %v1528 = vld [vmem:[%s1527] sm:$0xf]
        %v1529 = vld [vmem:[%s1527 + $0x4] sm:$0xf]
        %v1530 = vld [vmem:[%s1527 + $0x8] sm:$0xf]
        %v1531 = vld [vmem:[%s1527 + $0xc] sm:$0xf]
        %v1532 = vld [vmem:[%s1527 + $0x10] sm:$0xf]
        %v1533 = vld [vmem:[%s1527 + $0x14] sm:$0xf]
        %v1534 = vld [vmem:[%s1527 + $0x18] sm:$0xf]
        %v1535 = vld [vmem:[%s1527 + $0x1c] sm:$0xf]
        %v1536 = vld [vmem:[%s1527 + $0x20] sm:$0xf]
        %v1537 = vld [vmem:[%s1527 + $0x24] sm:$0xf]
        %v1538 = vld [vmem:[%s1527 + $0x28] sm:$0xf]
        %v1539 = vld [vmem:[%s1527 + $0x2c] sm:$0xf]
        %v1540 = vld [vmem:[%s1527 + $0x30] sm:$0xf]
        %v1541 = vld [vmem:[%s1527 + $0x34] sm:$0xf]
        %v1542 = vld [vmem:[%s1527 + $0x38] sm:$0xf]
        %v1543 = vld [vmem:[%s1527 + $0x3c] sm:$0xf]
        %v1560 = vunpack.c.l.b16 %v1528
        %v1561 = vunpack.c.l.b16 %v1529
        %v1562 = vunpack.c.l.b16 %v1530
        %v1563 = vunpack.c.l.b16 %v1531
        %v1564 = vunpack.c.l.b16 %v1532
        %v1565 = vunpack.c.l.b16 %v1533
        %v1566 = vunpack.c.l.b16 %v1534
        %v1567 = vunpack.c.l.b16 %v1535
        %v1568 = vunpack.c.l.b16 %v1536
        %v1569 = vunpack.c.l.b16 %v1537
        %v1570 = vunpack.c.l.b16 %v1538
        %v1571 = vunpack.c.l.b16 %v1539
        %v1572 = vunpack.c.l.b16 %v1540
        %v1573 = vunpack.c.l.b16 %v1541
        %v1574 = vunpack.c.l.b16 %v1542
        %v1575 = vunpack.c.l.b16 %v1543
        %v1576 = vpack.c.b16 %v1561, %v1560
        %v1577 = vpack.c.b16 %v1563, %v1562
        %v1578 = vpack.c.b16 %v1565, %v1564
        %v1579 = vpack.c.b16 %v1567, %v1566
        %v1580 = vpack.c.b16 %v1569, %v1568
        %v1581 = vpack.c.b16 %v1571, %v1570
        %v1582 = vpack.c.b16 %v1573, %v1572
        %v1583 = vpack.c.b16 %v1575, %v1574
        %1592 = vmatpush.bf16.msra.mxu0 %v1583
        %1593 = vmatpush.bf16.msra.mxu0 %v1582
        %1594 = vmatpush.bf16.msra.mxu0 %v1581
        %1595 = vmatpush.bf16.msra.mxu0 %v1580
        %1596 = vmatpush.bf16.msra.mxu0 %v1579
        %1597 = vmatpush.bf16.msra.mxu0 %v1578
        %1598 = vmatpush.bf16.msra.mxu0 %v1577
        %1599 = vmatpush.bf16.msra.mxu0 %v1576
        %1600 = vmatmul.bf16.gmra.mxu0 %v934
        %v1601 = vpop.f32.mrf.mxu0
        %v1602 = vadd.f32 0.0, %v1601
        %v1603 = vpop.f32.mrf.mxu0
        %v1604 = vadd.f32 0.0, %v1603
        %1605 = vmatmul.bf16.gmra.mxu0 %v935
        %v1606 = vpop.f32.mrf.mxu0
        %v1607 = vadd.f32 0.0, %v1606
        %v1608 = vpop.f32.mrf.mxu0
        %v1609 = vadd.f32 0.0, %v1608
        %1610 = vmatmul.bf16.gmra.mxu0 %v936
        %v1611 = vpop.f32.mrf.mxu0
        %v1612 = vadd.f32 0.0, %v1611
        %v1613 = vpop.f32.mrf.mxu0
        %v1614 = vadd.f32 0.0, %v1613
        %1615 = vmatmul.bf16.gmra.mxu0 %v937
        %v1616 = vpop.f32.mrf.mxu0
        %v1617 = vadd.f32 0.0, %v1616
        %v1618 = vpop.f32.mrf.mxu0
        %v1619 = vadd.f32 0.0, %v1618
        %1620 = vmatmul.bf16.gmra.mxu0 %v938
        %v1621 = vpop.f32.mrf.mxu0
        %v1622 = vadd.f32 0.0, %v1621
        %v1623 = vpop.f32.mrf.mxu0
        %v1624 = vadd.f32 0.0, %v1623
        %1625 = vmatmul.bf16.gmra.mxu0 %v939
        %v1626 = vpop.f32.mrf.mxu0
        %v1627 = vadd.f32 0.0, %v1626
        %v1628 = vpop.f32.mrf.mxu0
        %v1629 = vadd.f32 0.0, %v1628
        %1630 = vmatmul.bf16.gmra.mxu0 %v940
        %v1631 = vpop.f32.mrf.mxu0
        %v1632 = vadd.f32 0.0, %v1631
        %v1633 = vpop.f32.mrf.mxu0
        %v1634 = vadd.f32 0.0, %v1633
        %1635 = vmatmul.bf16.gmra.mxu0 %v941
        %v1636 = vpop.f32.mrf.mxu0
        %v1637 = vadd.f32 0.0, %v1636
        %v1638 = vpop.f32.mrf.mxu0
        %v1639 = vadd.f32 0.0, %v1638
        %1640 = vmatmul.bf16.gmra.mxu0 %v942
        %v1641 = vpop.f32.mrf.mxu0
        %v1642 = vadd.f32 0.0, %v1641
        %v1643 = vpop.f32.mrf.mxu0
        %v1644 = vadd.f32 0.0, %v1643
        %1645 = vmatmul.bf16.gmra.mxu0 %v943
        %v1646 = vpop.f32.mrf.mxu0
        %v1647 = vadd.f32 0.0, %v1646
        %v1648 = vpop.f32.mrf.mxu0
        %v1649 = vadd.f32 0.0, %v1648
        %1650 = vmatmul.bf16.gmra.mxu0 %v944
        %v1651 = vpop.f32.mrf.mxu0
        %v1652 = vadd.f32 0.0, %v1651
        %v1653 = vpop.f32.mrf.mxu0
        %v1654 = vadd.f32 0.0, %v1653
        %1655 = vmatmul.bf16.gmra.mxu0 %v945
        %v1656 = vpop.f32.mrf.mxu0
        %v1657 = vadd.f32 0.0, %v1656
        %v1658 = vpop.f32.mrf.mxu0
        %v1659 = vadd.f32 0.0, %v1658
        %1660 = vmatmul.bf16.gmra.mxu0 %v946
        %v1661 = vpop.f32.mrf.mxu0
        %v1662 = vadd.f32 0.0, %v1661
        %v1663 = vpop.f32.mrf.mxu0
        %v1664 = vadd.f32 0.0, %v1663
        %1665 = vmatmul.bf16.gmra.mxu0 %v947
        %v1666 = vpop.f32.mrf.mxu0
        %v1667 = vadd.f32 0.0, %v1666
        %v1668 = vpop.f32.mrf.mxu0
        %v1669 = vadd.f32 0.0, %v1668
        %1670 = vmatmul.bf16.gmra.mxu0 %v948
        %v1671 = vpop.f32.mrf.mxu0
        %v1672 = vadd.f32 0.0, %v1671
        %v1673 = vpop.f32.mrf.mxu0
        %v1674 = vadd.f32 0.0, %v1673
        %1675 = vmatmul.bf16.gmra.mxu0 %v1526
        %v1676 = vpop.f32.mrf.mxu0
        %v1677 = vadd.f32 0.0, %v1676
        %v1678 = vpop.f32.mrf.mxu0
        %v1679 = vadd.f32 0.0, %v1678
        %1680 = vdwg.mxu0
        %v1681 = vadd.f32 %v1487, %v1602
        %v1682 = vadd.f32 %v1488, %v1604
        %v1683 = vadd.f32 %v1489, %v1607
        %v1684 = vadd.f32 %v1490, %v1609
        %v1685 = vadd.f32 %v1491, %v1612
        %v1686 = vadd.f32 %v1492, %v1614
        %v1687 = vadd.f32 %v1493, %v1617
        %v1688 = vadd.f32 %v1494, %v1619
        %v1689 = vadd.f32 %v1495, %v1622
        %v1690 = vadd.f32 %v1496, %v1624
        %v1691 = vadd.f32 %v1497, %v1627
        %v1692 = vadd.f32 %v1498, %v1629
        %v1693 = vadd.f32 %v1499, %v1632
        %v1694 = vadd.f32 %v1500, %v1634
        %v1695 = vadd.f32 %v1501, %v1637
        %v1696 = vadd.f32 %v1502, %v1639
        %v1697 = vadd.f32 %v1503, %v1642
        %v1698 = vadd.f32 %v1504, %v1644
        %v1699 = vadd.f32 %v1505, %v1647
        %v1700 = vadd.f32 %v1506, %v1649
        %v1701 = vadd.f32 %v1507, %v1652
        %v1702 = vadd.f32 %v1508, %v1654
        %v1703 = vadd.f32 %v1509, %v1657
        %v1704 = vadd.f32 %v1510, %v1659
        %v1705 = vadd.f32 %v1511, %v1662
        %v1706 = vadd.f32 %v1512, %v1664
        %v1707 = vadd.f32 %v1513, %v1667
        %v1708 = vadd.f32 %v1514, %v1669
        %v1709 = vadd.f32 %v1515, %v1672
        %v1710 = vadd.f32 %v1516, %v1674
        %v1711 = vadd.f32 %v1517, %v1677
        %v1712 = vadd.f32 %v1518, %v1679
        %v1713 = vpack.c.bf16 %v318, %v317
        %s1714 = scalar_lea.vmem %s1, 384
        %v1715 = vld [vmem:[%s1714] sm:$0xf]
        %v1716 = vld [vmem:[%s1714 + $0x4] sm:$0xf]
        %v1717 = vld [vmem:[%s1714 + $0x8] sm:$0xf]
        %v1718 = vld [vmem:[%s1714 + $0xc] sm:$0xf]
        %v1719 = vld [vmem:[%s1714 + $0x10] sm:$0xf]
        %v1720 = vld [vmem:[%s1714 + $0x14] sm:$0xf]
        %v1721 = vld [vmem:[%s1714 + $0x18] sm:$0xf]
        %v1722 = vld [vmem:[%s1714 + $0x1c] sm:$0xf]
        %v1723 = vld [vmem:[%s1714 + $0x20] sm:$0xf]
        %v1724 = vld [vmem:[%s1714 + $0x24] sm:$0xf]
        %v1725 = vld [vmem:[%s1714 + $0x28] sm:$0xf]
        %v1726 = vld [vmem:[%s1714 + $0x2c] sm:$0xf]
        %v1727 = vld [vmem:[%s1714 + $0x30] sm:$0xf]
        %v1728 = vld [vmem:[%s1714 + $0x34] sm:$0xf]
        %v1729 = vld [vmem:[%s1714 + $0x38] sm:$0xf]
        %v1730 = vld [vmem:[%s1714 + $0x3c] sm:$0xf]
        %v1747 = vunpack.c.l.b16 %v1715
        %v1748 = vunpack.c.l.b16 %v1716
        %v1749 = vunpack.c.l.b16 %v1717
        %v1750 = vunpack.c.l.b16 %v1718
        %v1751 = vunpack.c.l.b16 %v1719
        %v1752 = vunpack.c.l.b16 %v1720
        %v1753 = vunpack.c.l.b16 %v1721
        %v1754 = vunpack.c.l.b16 %v1722
        %v1755 = vunpack.c.l.b16 %v1723
        %v1756 = vunpack.c.l.b16 %v1724
        %v1757 = vunpack.c.l.b16 %v1725
        %v1758 = vunpack.c.l.b16 %v1726
        %v1759 = vunpack.c.l.b16 %v1727
        %v1760 = vunpack.c.l.b16 %v1728
        %v1761 = vunpack.c.l.b16 %v1729
        %v1762 = vunpack.c.l.b16 %v1730
        %v1763 = vpack.c.b16 %v1748, %v1747
        %v1764 = vpack.c.b16 %v1750, %v1749
        %v1765 = vpack.c.b16 %v1752, %v1751
        %v1766 = vpack.c.b16 %v1754, %v1753
        %v1767 = vpack.c.b16 %v1756, %v1755
        %v1768 = vpack.c.b16 %v1758, %v1757
        %v1769 = vpack.c.b16 %v1760, %v1759
        %v1770 = vpack.c.b16 %v1762, %v1761
        %1779 = vmatpush.bf16.msra.mxu0 %v1770
        %1780 = vmatpush.bf16.msra.mxu0 %v1769
        %1781 = vmatpush.bf16.msra.mxu0 %v1768
        %1782 = vmatpush.bf16.msra.mxu0 %v1767
        %1783 = vmatpush.bf16.msra.mxu0 %v1766
        %1784 = vmatpush.bf16.msra.mxu0 %v1765
        %1785 = vmatpush.bf16.msra.mxu0 %v1764
        %1786 = vmatpush.bf16.msra.mxu0 %v1763
        %1787 = vmatmul.bf16.gmra.mxu0 %v322
        %v1788 = vpop.f32.mrf.mxu0
        %v1789 = vadd.f32 0.0, %v1788
        %v1790 = vpop.f32.mrf.mxu0
        %v1791 = vadd.f32 0.0, %v1790
        %1792 = vmatmul.bf16.gmra.mxu0 %v323
        %v1793 = vpop.f32.mrf.mxu0
        %v1794 = vadd.f32 0.0, %v1793
        %v1795 = vpop.f32.mrf.mxu0
        %v1796 = vadd.f32 0.0, %v1795
        %1797 = vmatmul.bf16.gmra.mxu0 %v324
        %v1798 = vpop.f32.mrf.mxu0
        %v1799 = vadd.f32 0.0, %v1798
        %v1800 = vpop.f32.mrf.mxu0
        %v1801 = vadd.f32 0.0, %v1800
        %1802 = vmatmul.bf16.gmra.mxu0 %v325
        %v1803 = vpop.f32.mrf.mxu0
        %v1804 = vadd.f32 0.0, %v1803
        %v1805 = vpop.f32.mrf.mxu0
        %v1806 = vadd.f32 0.0, %v1805
        %1807 = vmatmul.bf16.gmra.mxu0 %v326
        %v1808 = vpop.f32.mrf.mxu0
        %v1809 = vadd.f32 0.0, %v1808
        %v1810 = vpop.f32.mrf.mxu0
        %v1811 = vadd.f32 0.0, %v1810
        %1812 = vmatmul.bf16.gmra.mxu0 %v327
        %v1813 = vpop.f32.mrf.mxu0
        %v1814 = vadd.f32 0.0, %v1813
        %v1815 = vpop.f32.mrf.mxu0
        %v1816 = vadd.f32 0.0, %v1815
        %1817 = vmatmul.bf16.gmra.mxu0 %v328
        %v1818 = vpop.f32.mrf.mxu0
        %v1819 = vadd.f32 0.0, %v1818
        %v1820 = vpop.f32.mrf.mxu0
        %v1821 = vadd.f32 0.0, %v1820
        %1822 = vmatmul.bf16.gmra.mxu0 %v329
        %v1823 = vpop.f32.mrf.mxu0
        %v1824 = vadd.f32 0.0, %v1823
        %v1825 = vpop.f32.mrf.mxu0
        %v1826 = vadd.f32 0.0, %v1825
        %1827 = vmatmul.bf16.gmra.mxu0 %v330
        %v1828 = vpop.f32.mrf.mxu0
        %v1829 = vadd.f32 0.0, %v1828
        %v1830 = vpop.f32.mrf.mxu0
        %v1831 = vadd.f32 0.0, %v1830
        %1832 = vmatmul.bf16.gmra.mxu0 %v331
        %v1833 = vpop.f32.mrf.mxu0
        %v1834 = vadd.f32 0.0, %v1833
        %v1835 = vpop.f32.mrf.mxu0
        %v1836 = vadd.f32 0.0, %v1835
        %1837 = vmatmul.bf16.gmra.mxu0 %v332
        %v1838 = vpop.f32.mrf.mxu0
        %v1839 = vadd.f32 0.0, %v1838
        %v1840 = vpop.f32.mrf.mxu0
        %v1841 = vadd.f32 0.0, %v1840
        %1842 = vmatmul.bf16.gmra.mxu0 %v333
        %v1843 = vpop.f32.mrf.mxu0
        %v1844 = vadd.f32 0.0, %v1843
        %v1845 = vpop.f32.mrf.mxu0
        %v1846 = vadd.f32 0.0, %v1845
        %1847 = vmatmul.bf16.gmra.mxu0 %v334
        %v1848 = vpop.f32.mrf.mxu0
        %v1849 = vadd.f32 0.0, %v1848
        %v1850 = vpop.f32.mrf.mxu0
        %v1851 = vadd.f32 0.0, %v1850
        %1852 = vmatmul.bf16.gmra.mxu0 %v335
        %v1853 = vpop.f32.mrf.mxu0
        %v1854 = vadd.f32 0.0, %v1853
        %v1855 = vpop.f32.mrf.mxu0
        %v1856 = vadd.f32 0.0, %v1855
        %1857 = vmatmul.bf16.gmra.mxu0 %v1135
        %v1858 = vpop.f32.mrf.mxu0
        %v1859 = vadd.f32 0.0, %v1858
        %v1860 = vpop.f32.mrf.mxu0
        %v1861 = vadd.f32 0.0, %v1860
        %1862 = vmatmul.bf16.gmra.mxu0 %v1713
        %v1863 = vpop.f32.mrf.mxu0
        %v1864 = vadd.f32 0.0, %v1863
        %v1865 = vpop.f32.mrf.mxu0
        %v1866 = vadd.f32 0.0, %v1865
        %1867 = vdwg.mxu0
        %v1868 = vadd.f32 %v1681, %v1789
        %v1869 = vadd.f32 %v1682, %v1791
        %v1870 = vadd.f32 %v1683, %v1794
        %v1871 = vadd.f32 %v1684, %v1796
        %v1872 = vadd.f32 %v1685, %v1799
        %v1873 = vadd.f32 %v1686, %v1801
        %v1874 = vadd.f32 %v1687, %v1804
        %v1875 = vadd.f32 %v1688, %v1806
        %v1876 = vadd.f32 %v1689, %v1809
        %v1877 = vadd.f32 %v1690, %v1811
        %v1878 = vadd.f32 %v1691, %v1814
        %v1879 = vadd.f32 %v1692, %v1816
        %v1880 = vadd.f32 %v1693, %v1819
        %v1881 = vadd.f32 %v1694, %v1821
        %v1882 = vadd.f32 %v1695, %v1824
        %v1883 = vadd.f32 %v1696, %v1826
        %v1884 = vadd.f32 %v1697, %v1829
        %v1885 = vadd.f32 %v1698, %v1831
        %v1886 = vadd.f32 %v1699, %v1834
        %v1887 = vadd.f32 %v1700, %v1836
        %v1888 = vadd.f32 %v1701, %v1839
        %v1889 = vadd.f32 %v1702, %v1841
        %v1890 = vadd.f32 %v1703, %v1844
        %v1891 = vadd.f32 %v1704, %v1846
        %v1892 = vadd.f32 %v1705, %v1849
        %v1893 = vadd.f32 %v1706, %v1851
        %v1894 = vadd.f32 %v1707, %v1854
        %v1895 = vadd.f32 %v1708, %v1856
        %v1896 = vadd.f32 %v1709, %v1859
        %v1897 = vadd.f32 %v1710, %v1861
        %v1898 = vadd.f32 %v1711, %v1864
        %v1899 = vadd.f32 %v1712, %v1866
        %v1903 = vrot.slane %v317, 1
        %v1904 = vrot.slane %v318, 1
        %v1905 = vsel %vm400, %v1903, %v1904
        %v1906 = vrot.slane %v319, 1
        %v1907 = vsel %vm400, %v1904, %v1906
        %v1910 = vpack.c.bf16 %v1907, %v1905
        %s1911 = scalar_lea.vmem %s1, 448
        %v1912 = vld [vmem:[%s1911] sm:$0xf]
        %v1913 = vld [vmem:[%s1911 + $0x4] sm:$0xf]
        %v1914 = vld [vmem:[%s1911 + $0x8] sm:$0xf]
        %v1915 = vld [vmem:[%s1911 + $0xc] sm:$0xf]
        %v1916 = vld [vmem:[%s1911 + $0x10] sm:$0xf]
        %v1917 = vld [vmem:[%s1911 + $0x14] sm:$0xf]
        %v1918 = vld [vmem:[%s1911 + $0x18] sm:$0xf]
        %v1919 = vld [vmem:[%s1911 + $0x1c] sm:$0xf]
        %v1920 = vld [vmem:[%s1911 + $0x20] sm:$0xf]
        %v1921 = vld [vmem:[%s1911 + $0x24] sm:$0xf]
        %v1922 = vld [vmem:[%s1911 + $0x28] sm:$0xf]
        %v1923 = vld [vmem:[%s1911 + $0x2c] sm:$0xf]
        %v1924 = vld [vmem:[%s1911 + $0x30] sm:$0xf]
        %v1925 = vld [vmem:[%s1911 + $0x34] sm:$0xf]
        %v1926 = vld [vmem:[%s1911 + $0x38] sm:$0xf]
        %v1927 = vld [vmem:[%s1911 + $0x3c] sm:$0xf]
        %v1944 = vunpack.c.l.b16 %v1912
        %v1945 = vunpack.c.l.b16 %v1913
        %v1946 = vunpack.c.l.b16 %v1914
        %v1947 = vunpack.c.l.b16 %v1915
        %v1948 = vunpack.c.l.b16 %v1916
        %v1949 = vunpack.c.l.b16 %v1917
        %v1950 = vunpack.c.l.b16 %v1918
        %v1951 = vunpack.c.l.b16 %v1919
        %v1952 = vunpack.c.l.b16 %v1920
        %v1953 = vunpack.c.l.b16 %v1921
        %v1954 = vunpack.c.l.b16 %v1922
        %v1955 = vunpack.c.l.b16 %v1923
        %v1956 = vunpack.c.l.b16 %v1924
        %v1957 = vunpack.c.l.b16 %v1925
        %v1958 = vunpack.c.l.b16 %v1926
        %v1959 = vunpack.c.l.b16 %v1927
        %v1960 = vpack.c.b16 %v1945, %v1944
        %v1961 = vpack.c.b16 %v1947, %v1946
        %v1962 = vpack.c.b16 %v1949, %v1948
        %v1963 = vpack.c.b16 %v1951, %v1950
        %v1964 = vpack.c.b16 %v1953, %v1952
        %v1965 = vpack.c.b16 %v1955, %v1954
        %v1966 = vpack.c.b16 %v1957, %v1956
        %v1967 = vpack.c.b16 %v1959, %v1958
        %1976 = vmatpush.bf16.msra.mxu0 %v1967
        %1977 = vmatpush.bf16.msra.mxu0 %v1966
        %1978 = vmatpush.bf16.msra.mxu0 %v1965
        %1979 = vmatpush.bf16.msra.mxu0 %v1964
        %1980 = vmatpush.bf16.msra.mxu0 %v1963
        %1981 = vmatpush.bf16.msra.mxu0 %v1962
        %1982 = vmatpush.bf16.msra.mxu0 %v1961
        %1983 = vmatpush.bf16.msra.mxu0 %v1960
        %1984 = vmatmul.bf16.gmra.mxu0 %v515
        %v1985 = vpop.f32.mrf.mxu0
        %v1986 = vadd.f32 0.0, %v1985
        %v1987 = vpop.f32.mrf.mxu0
        %v1988 = vadd.f32 0.0, %v1987
        %1989 = vmatmul.bf16.gmra.mxu0 %v516
        %v1990 = vpop.f32.mrf.mxu0
        %v1991 = vadd.f32 0.0, %v1990
        %v1992 = vpop.f32.mrf.mxu0
        %v1993 = vadd.f32 0.0, %v1992
        %1994 = vmatmul.bf16.gmra.mxu0 %v517
        %v1995 = vpop.f32.mrf.mxu0
        %v1996 = vadd.f32 0.0, %v1995
        %v1997 = vpop.f32.mrf.mxu0
        %v1998 = vadd.f32 0.0, %v1997
        %1999 = vmatmul.bf16.gmra.mxu0 %v518
        %v2000 = vpop.f32.mrf.mxu0
        %v2001 = vadd.f32 0.0, %v2000
        %v2002 = vpop.f32.mrf.mxu0
        %v2003 = vadd.f32 0.0, %v2002
        %2004 = vmatmul.bf16.gmra.mxu0 %v519
        %v2005 = vpop.f32.mrf.mxu0
        %v2006 = vadd.f32 0.0, %v2005
        %v2007 = vpop.f32.mrf.mxu0
        %v2008 = vadd.f32 0.0, %v2007
        %2009 = vmatmul.bf16.gmra.mxu0 %v520
        %v2010 = vpop.f32.mrf.mxu0
        %v2011 = vadd.f32 0.0, %v2010
        %v2012 = vpop.f32.mrf.mxu0
        %v2013 = vadd.f32 0.0, %v2012
        %2014 = vmatmul.bf16.gmra.mxu0 %v521
        %v2015 = vpop.f32.mrf.mxu0
        %v2016 = vadd.f32 0.0, %v2015
        %v2017 = vpop.f32.mrf.mxu0
        %v2018 = vadd.f32 0.0, %v2017
        %2019 = vmatmul.bf16.gmra.mxu0 %v522
        %v2020 = vpop.f32.mrf.mxu0
        %v2021 = vadd.f32 0.0, %v2020
        %v2022 = vpop.f32.mrf.mxu0
        %v2023 = vadd.f32 0.0, %v2022
        %2024 = vmatmul.bf16.gmra.mxu0 %v523
        %v2025 = vpop.f32.mrf.mxu0
        %v2026 = vadd.f32 0.0, %v2025
        %v2027 = vpop.f32.mrf.mxu0
        %v2028 = vadd.f32 0.0, %v2027
        %2029 = vmatmul.bf16.gmra.mxu0 %v524
        %v2030 = vpop.f32.mrf.mxu0
        %v2031 = vadd.f32 0.0, %v2030
        %v2032 = vpop.f32.mrf.mxu0
        %v2033 = vadd.f32 0.0, %v2032
        %2034 = vmatmul.bf16.gmra.mxu0 %v525
        %v2035 = vpop.f32.mrf.mxu0
        %v2036 = vadd.f32 0.0, %v2035
        %v2037 = vpop.f32.mrf.mxu0
        %v2038 = vadd.f32 0.0, %v2037
        %2039 = vmatmul.bf16.gmra.mxu0 %v526
        %v2040 = vpop.f32.mrf.mxu0
        %v2041 = vadd.f32 0.0, %v2040
        %v2042 = vpop.f32.mrf.mxu0
        %v2043 = vadd.f32 0.0, %v2042
        %2044 = vmatmul.bf16.gmra.mxu0 %v527
        %v2045 = vpop.f32.mrf.mxu0
        %v2046 = vadd.f32 0.0, %v2045
        %v2047 = vpop.f32.mrf.mxu0
        %v2048 = vadd.f32 0.0, %v2047
        %2049 = vmatmul.bf16.gmra.mxu0 %v528
        %v2050 = vpop.f32.mrf.mxu0
        %v2051 = vadd.f32 0.0, %v2050
        %v2052 = vpop.f32.mrf.mxu0
        %v2053 = vadd.f32 0.0, %v2052
        %2054 = vmatmul.bf16.gmra.mxu0 %v1332
        %v2055 = vpop.f32.mrf.mxu0
        %v2056 = vadd.f32 0.0, %v2055
        %v2057 = vpop.f32.mrf.mxu0
        %v2058 = vadd.f32 0.0, %v2057
        %2059 = vmatmul.bf16.gmra.mxu0 %v1910
        %v2060 = vpop.f32.mrf.mxu0
        %v2061 = vadd.f32 0.0, %v2060
        %v2062 = vpop.f32.mrf.mxu0
        %v2063 = vadd.f32 0.0, %v2062
        %2064 = vdwg.mxu0
        %v2065 = vadd.f32 %v1868, %v1986
        %v2066 = vadd.f32 %v1869, %v1988
        %v2067 = vadd.f32 %v1870, %v1991
        %v2068 = vadd.f32 %v1871, %v1993
        %v2069 = vadd.f32 %v1872, %v1996
        %v2070 = vadd.f32 %v1873, %v1998
        %v2071 = vadd.f32 %v1874, %v2001
        %v2072 = vadd.f32 %v1875, %v2003
        %v2073 = vadd.f32 %v1876, %v2006
        %v2074 = vadd.f32 %v1877, %v2008
        %v2075 = vadd.f32 %v1878, %v2011
        %v2076 = vadd.f32 %v1879, %v2013
        %v2077 = vadd.f32 %v1880, %v2016
        %v2078 = vadd.f32 %v1881, %v2018
        %v2079 = vadd.f32 %v1882, %v2021
        %v2080 = vadd.f32 %v1883, %v2023
        %v2081 = vadd.f32 %v1884, %v2026
        %v2082 = vadd.f32 %v1885, %v2028
        %v2083 = vadd.f32 %v1886, %v2031
        %v2084 = vadd.f32 %v1887, %v2033
        %v2085 = vadd.f32 %v1888, %v2036
        %v2086 = vadd.f32 %v1889, %v2038
        %v2087 = vadd.f32 %v1890, %v2041
        %v2088 = vadd.f32 %v1891, %v2043
        %v2089 = vadd.f32 %v1892, %v2046
        %v2090 = vadd.f32 %v1893, %v2048
        %v2091 = vadd.f32 %v1894, %v2051
        %v2092 = vadd.f32 %v1895, %v2053
        %v2093 = vadd.f32 %v1896, %v2056
        %v2094 = vadd.f32 %v1897, %v2058
        %v2095 = vadd.f32 %v1898, %v2061
        %v2096 = vadd.f32 %v1899, %v2063
        %v2097 = vrot.slane %v317, 2
        %v2098 = vrot.slane %v318, 2
        %v2099 = vsel %vm820, %v2097, %v2098
        %v2100 = vrot.slane %v319, 2
        %v2101 = vsel %vm820, %v2098, %v2100
        %v2104 = vpack.c.bf16 %v2101, %v2099
        %s2105 = scalar_lea.vmem %s1, 512
        %v2106 = vld [vmem:[%s2105] sm:$0xf]
        %v2107 = vld [vmem:[%s2105 + $0x4] sm:$0xf]
        %v2108 = vld [vmem:[%s2105 + $0x8] sm:$0xf]
        %v2109 = vld [vmem:[%s2105 + $0xc] sm:$0xf]
        %v2110 = vld [vmem:[%s2105 + $0x10] sm:$0xf]
        %v2111 = vld [vmem:[%s2105 + $0x14] sm:$0xf]
        %v2112 = vld [vmem:[%s2105 + $0x18] sm:$0xf]
        %v2113 = vld [vmem:[%s2105 + $0x1c] sm:$0xf]
        %v2114 = vld [vmem:[%s2105 + $0x20] sm:$0xf]
        %v2115 = vld [vmem:[%s2105 + $0x24] sm:$0xf]
        %v2116 = vld [vmem:[%s2105 + $0x28] sm:$0xf]
        %v2117 = vld [vmem:[%s2105 + $0x2c] sm:$0xf]
        %v2118 = vld [vmem:[%s2105 + $0x30] sm:$0xf]
        %v2119 = vld [vmem:[%s2105 + $0x34] sm:$0xf]
        %v2120 = vld [vmem:[%s2105 + $0x38] sm:$0xf]
        %v2121 = vld [vmem:[%s2105 + $0x3c] sm:$0xf]
        %v2138 = vunpack.c.l.b16 %v2106
        %v2139 = vunpack.c.l.b16 %v2107
        %v2140 = vunpack.c.l.b16 %v2108
        %v2141 = vunpack.c.l.b16 %v2109
        %v2142 = vunpack.c.l.b16 %v2110
        %v2143 = vunpack.c.l.b16 %v2111
        %v2144 = vunpack.c.l.b16 %v2112
        %v2145 = vunpack.c.l.b16 %v2113
        %v2146 = vunpack.c.l.b16 %v2114
        %v2147 = vunpack.c.l.b16 %v2115
        %v2148 = vunpack.c.l.b16 %v2116
        %v2149 = vunpack.c.l.b16 %v2117
        %v2150 = vunpack.c.l.b16 %v2118
        %v2151 = vunpack.c.l.b16 %v2119
        %v2152 = vunpack.c.l.b16 %v2120
        %v2153 = vunpack.c.l.b16 %v2121
        %v2154 = vpack.c.b16 %v2139, %v2138
        %v2155 = vpack.c.b16 %v2141, %v2140
        %v2156 = vpack.c.b16 %v2143, %v2142
        %v2157 = vpack.c.b16 %v2145, %v2144
        %v2158 = vpack.c.b16 %v2147, %v2146
        %v2159 = vpack.c.b16 %v2149, %v2148
        %v2160 = vpack.c.b16 %v2151, %v2150
        %v2161 = vpack.c.b16 %v2153, %v2152
        %2170 = vmatpush.bf16.msra.mxu0 %v2161
        %2171 = vmatpush.bf16.msra.mxu0 %v2160
        %2172 = vmatpush.bf16.msra.mxu0 %v2159
        %2173 = vmatpush.bf16.msra.mxu0 %v2158
        %2174 = vmatpush.bf16.msra.mxu0 %v2157
        %2175 = vmatpush.bf16.msra.mxu0 %v2156
        %2176 = vmatpush.bf16.msra.mxu0 %v2155
        %2177 = vmatpush.bf16.msra.mxu0 %v2154
        %2178 = vmatmul.bf16.gmra.mxu0 %v935
        %v2179 = vpop.f32.mrf.mxu0
        %v2180 = vadd.f32 0.0, %v2179
        %v2181 = vpop.f32.mrf.mxu0
        %v2182 = vadd.f32 0.0, %v2181
        %2183 = vmatmul.bf16.gmra.mxu0 %v936
        %v2184 = vpop.f32.mrf.mxu0
        %v2185 = vadd.f32 0.0, %v2184
        %v2186 = vpop.f32.mrf.mxu0
        %v2187 = vadd.f32 0.0, %v2186
        %2188 = vmatmul.bf16.gmra.mxu0 %v937
        %v2189 = vpop.f32.mrf.mxu0
        %v2190 = vadd.f32 0.0, %v2189
        %v2191 = vpop.f32.mrf.mxu0
        %v2192 = vadd.f32 0.0, %v2191
        %2193 = vmatmul.bf16.gmra.mxu0 %v938
        %v2194 = vpop.f32.mrf.mxu0
        %v2195 = vadd.f32 0.0, %v2194
        %v2196 = vpop.f32.mrf.mxu0
        %v2197 = vadd.f32 0.0, %v2196
        %2198 = vmatmul.bf16.gmra.mxu0 %v939
        %v2199 = vpop.f32.mrf.mxu0
        %v2200 = vadd.f32 0.0, %v2199
        %v2201 = vpop.f32.mrf.mxu0
        %v2202 = vadd.f32 0.0, %v2201
        %2203 = vmatmul.bf16.gmra.mxu0 %v940
        %v2204 = vpop.f32.mrf.mxu0
        %v2205 = vadd.f32 0.0, %v2204
        %v2206 = vpop.f32.mrf.mxu0
        %v2207 = vadd.f32 0.0, %v2206
        %2208 = vmatmul.bf16.gmra.mxu0 %v941
        %v2209 = vpop.f32.mrf.mxu0
        %v2210 = vadd.f32 0.0, %v2209
        %v2211 = vpop.f32.mrf.mxu0
        %v2212 = vadd.f32 0.0, %v2211
        %2213 = vmatmul.bf16.gmra.mxu0 %v942
        %v2214 = vpop.f32.mrf.mxu0
        %v2215 = vadd.f32 0.0, %v2214
        %v2216 = vpop.f32.mrf.mxu0
        %v2217 = vadd.f32 0.0, %v2216
        %2218 = vmatmul.bf16.gmra.mxu0 %v943
        %v2219 = vpop.f32.mrf.mxu0
        %v2220 = vadd.f32 0.0, %v2219
        %v2221 = vpop.f32.mrf.mxu0
        %v2222 = vadd.f32 0.0, %v2221
        %2223 = vmatmul.bf16.gmra.mxu0 %v944
        %v2224 = vpop.f32.mrf.mxu0
        %v2225 = vadd.f32 0.0, %v2224
        %v2226 = vpop.f32.mrf.mxu0
        %v2227 = vadd.f32 0.0, %v2226
        %2228 = vmatmul.bf16.gmra.mxu0 %v945
        %v2229 = vpop.f32.mrf.mxu0
        %v2230 = vadd.f32 0.0, %v2229
        %v2231 = vpop.f32.mrf.mxu0
        %v2232 = vadd.f32 0.0, %v2231
        %2233 = vmatmul.bf16.gmra.mxu0 %v946
        %v2234 = vpop.f32.mrf.mxu0
        %v2235 = vadd.f32 0.0, %v2234
        %v2236 = vpop.f32.mrf.mxu0
        %v2237 = vadd.f32 0.0, %v2236
        %2238 = vmatmul.bf16.gmra.mxu0 %v947
        %v2239 = vpop.f32.mrf.mxu0
        %v2240 = vadd.f32 0.0, %v2239
        %v2241 = vpop.f32.mrf.mxu0
        %v2242 = vadd.f32 0.0, %v2241
        %2243 = vmatmul.bf16.gmra.mxu0 %v948
        %v2244 = vpop.f32.mrf.mxu0
        %v2245 = vadd.f32 0.0, %v2244
        %v2246 = vpop.f32.mrf.mxu0
        %v2247 = vadd.f32 0.0, %v2246
        %2248 = vmatmul.bf16.gmra.mxu0 %v1526
        %v2249 = vpop.f32.mrf.mxu0
        %v2250 = vadd.f32 0.0, %v2249
        %v2251 = vpop.f32.mrf.mxu0
        %v2252 = vadd.f32 0.0, %v2251
        %2253 = vmatmul.bf16.gmra.mxu0 %v2104
        %v2254 = vpop.f32.mrf.mxu0
        %v2255 = vadd.f32 0.0, %v2254
        %v2256 = vpop.f32.mrf.mxu0
        %v2257 = vadd.f32 0.0, %v2256
        %2258 = vdwg.mxu0
        %v2259 = vadd.f32 %v2065, %v2180
        %v2260 = vadd.f32 %v2066, %v2182
        %v2261 = vadd.f32 %v2067, %v2185
        %v2262 = vadd.f32 %v2068, %v2187
        %v2263 = vadd.f32 %v2069, %v2190
        %v2264 = vadd.f32 %v2070, %v2192
        %v2265 = vadd.f32 %v2071, %v2195
        %v2266 = vadd.f32 %v2072, %v2197
        %v2267 = vadd.f32 %v2073, %v2200
        %v2268 = vadd.f32 %v2074, %v2202
        %v2269 = vadd.f32 %v2075, %v2205
        %v2270 = vadd.f32 %v2076, %v2207
        %v2271 = vadd.f32 %v2077, %v2210
        %v2272 = vadd.f32 %v2078, %v2212
        %v2273 = vadd.f32 %v2079, %v2215
        %v2274 = vadd.f32 %v2080, %v2217
        %v2275 = vadd.f32 %v2081, %v2220
        %v2276 = vadd.f32 %v2082, %v2222
        %v2277 = vadd.f32 %v2083, %v2225
        %v2278 = vadd.f32 %v2084, %v2227
        %v2279 = vadd.f32 %v2085, %v2230
        %v2280 = vadd.f32 %v2086, %v2232
        %v2281 = vadd.f32 %v2087, %v2235
        %v2282 = vadd.f32 %v2088, %v2237
        %v2283 = vadd.f32 %v2089, %v2240
        %v2284 = vadd.f32 %v2090, %v2242
        %v2285 = vadd.f32 %v2091, %v2245
        %v2286 = vadd.f32 %v2092, %v2247
        %v2287 = vadd.f32 %v2093, %v2250
        %v2288 = vadd.f32 %v2094, %v2252
        %v2289 = vadd.f32 %v2095, %v2255
        %v2290 = vadd.f32 %v2096, %v2257
        %2291 = vst [vmem:[%s194] sm:$0xff] %v2259
        %2292 = vst [vmem:[%s194 + $0x8] sm:$0xff] %v2260
        %2293 = vst [vmem:[%s194 + $0x10] sm:$0xff] %v2261
        %2294 = vst [vmem:[%s194 + $0x18] sm:$0xff] %v2262
        %2295 = vst [vmem:[%s194 + $0x20] sm:$0xff] %v2263
        %2296 = vst [vmem:[%s194 + $0x28] sm:$0xff] %v2264
        %2297 = vst [vmem:[%s194 + $0x30] sm:$0xff] %v2265
        %2298 = vst [vmem:[%s194 + $0x38] sm:$0xff] %v2266
        %2299 = vst [vmem:[%s194 + $0x40] sm:$0xff] %v2267
        %2300 = vst [vmem:[%s194 + $0x48] sm:$0xff] %v2268
        %2301 = vst [vmem:[%s194 + $0x50] sm:$0xff] %v2269
        %2302 = vst [vmem:[%s194 + $0x58] sm:$0xff] %v2270
        %2303 = vst [vmem:[%s194 + $0x60] sm:$0xff] %v2271
        %2304 = vst [vmem:[%s194 + $0x68] sm:$0xff] %v2272
        %2305 = vst [vmem:[%s194 + $0x70] sm:$0xff] %v2273
        %2306 = vst [vmem:[%s194 + $0x78] sm:$0xff] %v2274
        %2307 = vst [vmem:[%s194 + $0x80] sm:$0xff] %v2275
        %2308 = vst [vmem:[%s194 + $0x88] sm:$0xff] %v2276
        %2309 = vst [vmem:[%s194 + $0x90] sm:$0xff] %v2277
        %2310 = vst [vmem:[%s194 + $0x98] sm:$0xff] %v2278
        %2311 = vst [vmem:[%s194 + $0xa0] sm:$0xff] %v2279
        %2312 = vst [vmem:[%s194 + $0xa8] sm:$0xff] %v2280
        %2313 = vst [vmem:[%s194 + $0xb0] sm:$0xff] %v2281
        %2314 = vst [vmem:[%s194 + $0xb8] sm:$0xff] %v2282
        %2315 = vst [vmem:[%s194 + $0xc0] sm:$0xff] %v2283
        %2316 = vst [vmem:[%s194 + $0xc8] sm:$0xff] %v2284
        %2317 = vst [vmem:[%s194 + $0xd0] sm:$0xff] %v2285
        %2318 = vst [vmem:[%s194 + $0xd8] sm:$0xff] %v2286
        %2319 = vst [vmem:[%s194 + $0xe0] sm:$0xff] %v2287
        %2320 = vst [vmem:[%s194 + $0xe8] sm:$0xff] %v2288
        %2321 = vst [vmem:[%s194 + $0xf0] sm:$0xff] %v2289
        %2322 = vst [vmem:[%s194 + $0xf8] sm:$0xff] %v2290
        %v2323 = vadd.f32 %v2259, %v2260
        %v2324 = vadd.f32 %v2323, %v2261
        %v2325 = vadd.f32 %v2324, %v2262
        %v2326 = vadd.f32 %v2325, %v2263
        %v2327 = vadd.f32 %v2326, %v2264
        %v2328 = vadd.f32 %v2327, %v2265
        %v2329 = vadd.f32 %v2328, %v2266
        %v2330 = vadd.f32 %v2329, %v2267
        %v2331 = vadd.f32 %v2330, %v2268
        %v2332 = vadd.f32 %v2331, %v2269
        %v2333 = vadd.f32 %v2332, %v2270
        %v2334 = vadd.f32 %v2333, %v2271
        %v2335 = vadd.f32 %v2334, %v2272
        %v2336 = vadd.f32 %v2335, %v2273
        %v2337 = vadd.f32 %v2336, %v2274
        %v2338 = vadd.f32 %v2337, %v2275
        %v2339 = vadd.f32 %v2338, %v2276
        %v2340 = vadd.f32 %v2339, %v2277
        %v2341 = vadd.f32 %v2340, %v2278
        %v2342 = vadd.f32 %v2341, %v2279
        %v2343 = vadd.f32 %v2342, %v2280
        %v2344 = vadd.f32 %v2343, %v2281
        %v2345 = vadd.f32 %v2344, %v2282
        %v2346 = vadd.f32 %v2345, %v2283
        %v2347 = vadd.f32 %v2346, %v2284
        %v2348 = vadd.f32 %v2347, %v2285
        %v2349 = vadd.f32 %v2348, %v2286
        %v2350 = vadd.f32 %v2349, %v2287
        %v2351 = vadd.f32 %v2350, %v2288
        %v2352 = vadd.f32 %v2351, %v2289
        %v2353 = vadd.f32 %v2352, %v2290
        %v2354 = vrot.slane %v2353, 4
        %v2355 = vadd.f32 %v2353, %v2354
        %v2356 = vrot.slane %v2355, 2
        %v2357 = vadd.f32 %v2355, %v2356
        %v2358 = vrot.slane %v2357, 1
        %v2359 = vadd.f32 %v2357, %v2358
        %2360 = vst [vmem:[%s200] sm:$0x1] %v2359
        %v2361 = vmul.f32 %v2259, %v2259
        %v2362 = vmul.f32 %v2260, %v2260
        %v2363 = vmul.f32 %v2261, %v2261
        %v2364 = vmul.f32 %v2262, %v2262
        %v2365 = vmul.f32 %v2263, %v2263
        %v2366 = vmul.f32 %v2264, %v2264
        %v2367 = vmul.f32 %v2265, %v2265
        %v2368 = vmul.f32 %v2266, %v2266
        %v2369 = vmul.f32 %v2267, %v2267
        %v2370 = vmul.f32 %v2268, %v2268
        %v2371 = vmul.f32 %v2269, %v2269
        %v2372 = vmul.f32 %v2270, %v2270
        %v2373 = vmul.f32 %v2271, %v2271
        %v2374 = vmul.f32 %v2272, %v2272
        %v2375 = vmul.f32 %v2273, %v2273
        %v2376 = vmul.f32 %v2274, %v2274
        %v2377 = vmul.f32 %v2275, %v2275
        %v2378 = vmul.f32 %v2276, %v2276
        %v2379 = vmul.f32 %v2277, %v2277
        %v2380 = vmul.f32 %v2278, %v2278
        %v2381 = vmul.f32 %v2279, %v2279
        %v2382 = vmul.f32 %v2280, %v2280
        %v2383 = vmul.f32 %v2281, %v2281
        %v2384 = vmul.f32 %v2282, %v2282
        %v2385 = vmul.f32 %v2283, %v2283
        %v2386 = vmul.f32 %v2284, %v2284
        %v2387 = vmul.f32 %v2285, %v2285
        %v2388 = vmul.f32 %v2286, %v2286
        %v2389 = vmul.f32 %v2287, %v2287
        %v2390 = vmul.f32 %v2288, %v2288
        %v2391 = vmul.f32 %v2289, %v2289
        %v2392 = vmul.f32 %v2290, %v2290
        %v2393 = vadd.f32 %v2361, %v2362
        %v2394 = vadd.f32 %v2393, %v2363
        %v2395 = vadd.f32 %v2394, %v2364
        %v2396 = vadd.f32 %v2395, %v2365
        %v2397 = vadd.f32 %v2396, %v2366
        %v2398 = vadd.f32 %v2397, %v2367
        %v2399 = vadd.f32 %v2398, %v2368
        %v2400 = vadd.f32 %v2399, %v2369
        %v2401 = vadd.f32 %v2400, %v2370
        %v2402 = vadd.f32 %v2401, %v2371
        %v2403 = vadd.f32 %v2402, %v2372
        %v2404 = vadd.f32 %v2403, %v2373
        %v2405 = vadd.f32 %v2404, %v2374
        %v2406 = vadd.f32 %v2405, %v2375
        %v2407 = vadd.f32 %v2406, %v2376
        %v2408 = vadd.f32 %v2407, %v2377
        %v2409 = vadd.f32 %v2408, %v2378
        %v2410 = vadd.f32 %v2409, %v2379
        %v2411 = vadd.f32 %v2410, %v2380
        %v2412 = vadd.f32 %v2411, %v2381
        %v2413 = vadd.f32 %v2412, %v2382
        %v2414 = vadd.f32 %v2413, %v2383
        %v2415 = vadd.f32 %v2414, %v2384
        %v2416 = vadd.f32 %v2415, %v2385
        %v2417 = vadd.f32 %v2416, %v2386
        %v2418 = vadd.f32 %v2417, %v2387
        %v2419 = vadd.f32 %v2418, %v2388
        %v2420 = vadd.f32 %v2419, %v2389
        %v2421 = vadd.f32 %v2420, %v2390
        %v2422 = vadd.f32 %v2421, %v2391
        %v2423 = vadd.f32 %v2422, %v2392
        %v2424 = vrot.slane %v2423, 4
        %v2425 = vadd.f32 %v2423, %v2424
        %v2426 = vrot.slane %v2425, 2
        %v2427 = vadd.f32 %v2425, %v2426
        %v2428 = vrot.slane %v2427, 1
        %v2429 = vadd.f32 %v2427, %v2428
        %2430 = vst [vmem:[%s206] sm:$0x1] %v2429
        %s2431 = sand.u32 %s77, 1
        %s2432 = scalar_lea.sflag [#allocation3], %s2431
        %s2433 = sand.u32 %s77, 1
        %s2434 = smul.addr %s2433, 256
        %s2435 = scalar_lea.vmem [#allocation2], %s2434
        %s2436 = sand.u32 %s22, 1
        %s2437 = scalar_lea.sflag [#allocation5], %s2436
        %s2438 = sand.u32 %s103, 1
        %s2439 = scalar_lea.vmem [#allocation4], %s2438
        %s2440 = sand.u32 %s22, 1
        %s2441 = scalar_lea.sflag [#allocation5], %s2440
        %s2442 = sand.u32 %s129, 1
        %s2443 = scalar_lea.vmem [#allocation6], %s2442
        // Predicated region
        $region29: #{tpu_custom_call.1} parent=27 // pred_check
          %p2444 = pneg %p87
        $region30: #{tpu_custom_call.1} parent=27 // pred_check_branch
          %2446 = sbr.rel (%p2444) target = $region32
        $region31: #{tpu_custom_call.1} parent=27 // pred_region
          %2448 = vsyncadd %s2432, 0
          %s2449 = smul.addr %s22, 32
          %s2450 = smul.addr %s2449, 8
          %s2451 = scalar_lea.hbm %s2, %s2450
          %s2452 = sshll.u32 %s2435, 4
          %s2453 = int_to_ptr.vmem [resolvable:$true] %s2452
          %s2454 = sshll.u32 %s2451, 4
          %s2455 = int_to_ptr.hbm [resolvable:$true] %s2454
          %2460 = dma.vmem_to_hbm [thread:$0]  %s2453, 4096, %s2455, %s2432, 128, 128, 8
        $region32: #{tpu_custom_call.1} parent=27 // pred_fallthru
          _
        // Predicated region
        $region33: #{tpu_custom_call.1} parent=27 // pred_check
          %p2461 = pneg %p113
        $region34: #{tpu_custom_call.1} parent=27 // pred_check_branch
          %2463 = sbr.rel (%p2461) target = $region36
        $region35: #{tpu_custom_call.1} parent=27 // pred_region
          %2465 = vsyncadd %s2437, 0
          %s2466 = scalar_lea.hbm %s3, %s22
          %s2468 = sshll.u32 %s2439, 4
          %s2469 = int_to_ptr.vmem [resolvable:$true] %s2468
          %s2470 = sshll.u32 %s2466, 4
          %s2471 = int_to_ptr.hbm [resolvable:$true] %s2470
          %2473 = dma.vmem_to_hbm [thread:$0]  %s2469, 16, %s2471, %s2437
        $region36: #{tpu_custom_call.1} parent=27 // pred_fallthru
          _
        // Predicated region
        $region37: #{tpu_custom_call.1} parent=27 // pred_check
          %p2474 = pneg %p139
        $region38: #{tpu_custom_call.1} parent=27 // pred_check_branch
          %2476 = sbr.rel (%p2474) target = $region40
        $region39: #{tpu_custom_call.1} parent=27 // pred_region
          %2478 = vsyncadd %s2441, 0
          %s2479 = scalar_lea.hbm %s4, %s22
          %s2481 = sshll.u32 %s2443, 4
          %s2482 = int_to_ptr.vmem [resolvable:$true] %s2481
          %s2483 = sshll.u32 %s2479, 4
          %s2484 = int_to_ptr.hbm [resolvable:$true] %s2483
          %2486 = dma.vmem_to_hbm [thread:$0]  %s2482, 16, %s2484, %s2441
        $region40: #{tpu_custom_call.1} parent=27 // pred_fallthru
          _
      $region28: #{tpu_custom_call.1} parent=5 // pred_fallthru
        _
      %p2487 = scmp.le.s32.totalorder 2, %s17
      // Predicated region
      $region41: #{tpu_custom_call.1} parent=5 // pred_check
        %p2488 = pneg %p2487
      $region42: #{tpu_custom_call.1} parent=5 // pred_check_branch
        %2490 = sbr.rel (%p2488) target = $region44
      $region43: #{tpu_custom_call.1} parent=5 // pred_region
        %s2491 = ssub.s32 %s17, 2
        // Predicated region
        $region45: #{tpu_custom_call.1} parent=43 // pred_check
          %p2492 = pneg %p93
        $region46: #{tpu_custom_call.1} parent=43 // pred_check_branch
          %2494 = sbr.rel (%p2492) target = $region48
        $region47: #{tpu_custom_call.1} parent=43 // pred_region
          %s2495 = sand.u32 %s78, 1
          %s2496 = scalar_lea.sflag [#allocation3], %s2495
          %s2497 = sand.u32 %s78, 1
          %s2498 = smul.addr %s2497, 256
          %s2499 = scalar_lea.vmem [#allocation2], %s2498
          %2501 = dma.done %s2496, 4096
        $region48: #{tpu_custom_call.1} parent=43 // pred_fallthru
          _
        // Predicated region
        $region49: #{tpu_custom_call.1} parent=43 // pred_check
          %p2502 = pneg %p119
        $region50: #{tpu_custom_call.1} parent=43 // pred_check_branch
          %2504 = sbr.rel (%p2502) target = $region52
        $region51: #{tpu_custom_call.1} parent=43 // pred_region
          %s2505 = sand.u32 %s23, 1
          %s2506 = scalar_lea.sflag [#allocation5], %s2505
          %s2507 = sand.u32 %s104, 1
          %s2508 = scalar_lea.vmem [#allocation4], %s2507
          %2510 = dma.done %s2506, 16
        $region52: #{tpu_custom_call.1} parent=43 // pred_fallthru
          _
        // Predicated region
        $region53: #{tpu_custom_call.1} parent=43 // pred_check
          %p2511 = pneg %p145
        $region54: #{tpu_custom_call.1} parent=43 // pred_check_branch
          %2513 = sbr.rel (%p2511) target = $region56
        $region55: #{tpu_custom_call.1} parent=43 // pred_region
          %s2514 = sand.u32 %s23, 1
          %s2515 = scalar_lea.sflag [#allocation5], %s2514
          %s2516 = sand.u32 %s130, 1
          %s2517 = scalar_lea.vmem [#allocation6], %s2516
          %2519 = dma.done %s2515, 16
        $region56: #{tpu_custom_call.1} parent=43 // pred_fallthru
          _
      $region44: #{tpu_custom_call.1} parent=5 // pred_fallthru
        _
    $region6: #{tpu_custom_call.1} parent=1 // loop_footer
      %s21 = sadd.s32 1, %s17
    $region7: #{tpu_custom_call.1} parent=1 // loop_footer_branch
      %16 = sbr.rel target = $region3
    $region8: #{tpu_custom_call.1} parent=1 // loop_exit
      _
    %2520 = vsyncpa [#allocation3], 1
    %s2521 = scalar_lea.sflag [#allocation3], 1
    %2522 = vsyncpa %s2521, 1
    %2523 = vsyncpa [#allocation5], 1
    %s2524 = scalar_lea.sflag [#allocation5], 1
    %2525 = vsyncpa %s2524, 1

</llo_original>
